<compile_context>
chip_gen: v6e
topology: v6e:2x2x1
jax: 0.10.0
libtpu: 0.0.40
codegen_flags: <defaults>
</compile_context>

<pallas_src>
from functools import partial

import jax
import jax.numpy as jnp
import numpy as np
from jax.experimental import pallas as pl
from jax.experimental.pallas import tpu as pltpu

_COL_CHUNK = 256  # input columns per chunk -> 128 lane-aligned output columns per band


def _haar_butterfly(wc: int) -> np.ndarray:
    """(2, wc, wc//2) f32: [0] = 0.5*(pair sum), [1] = 0.5*(odd col - even col).

    The Haar column butterfly is block-diagonal with identical blocks, so this one
    block is reused for every wc-wide input column chunk.
    """
    half = wc // 2
    k = np.arange(wc)
    hit = (k[:, None] // 2) == np.arange(half)[None, :]
    g_sum = np.where(hit, 0.5, 0.0)
    g_diff = np.where(hit, np.where(k[:, None] % 2 == 1, 0.5, -0.5), 0.0)
    return np.stack([g_sum, g_diff]).astype(np.float32)


def _cdiv(a: int, b: int) -> int:
    return -(-a // b)


def _pick_row_tile(rows: int, bytes_per_row: int, itemsize: int, batch: int,
                   target_bytes: int = 2 << 20) -> int:
    """Row tile: multiple of the dtype sublane tile, ~2 MiB of input per block,
    ragged last tile allowed (cdiv grid), and >=2 total grid steps when possible
    so both v7x TensorCores get work."""
    sub = {1: 32, 2: 16}.get(int(itemsize), 8)
    max_rows = max(sub, (int(target_bytes) // max(1, int(bytes_per_row))) // sub * sub)
    tr = rows if rows <= max_rows else max_rows
    if batch * _cdiv(rows, tr) < 2:
        half = _cdiv(_cdiv(rows, 2), sub) * sub
        if half < rows:
            tr = half
    return tr


def _dwt_kernel(g_ref, x_ref, o_ref, *, precision, dot_dtype):
    # g_ref: (2, Wc, Wc//2) Haar butterfly block ([0]=sum half, [1]=diff half), 0.5 folded in.
    # x_ref: (TR, 2*W)  row r=(c,hh): [:, :W] = image row 2hh, [:, W:] = image row 2hh+1.
    # o_ref: (4, TR, Wh) bands LL, HL, LH, HH.
    w = x_ref.shape[-1] // 2
    wc = g_ref.shape[1]
    half = wc // 2
    out_dt = o_ref.dtype
    g_sum = g_ref[0]
    g_diff = g_ref[1]
    # Static (trace-time unrolled) chunk loop: each chunk reads `wc` lane-aligned input
    # columns and writes `half` lane-aligned output columns per band, so loads and all
    # four band stores stay lane-dense whenever W % 256 == 0.
    for j in range(w // wc):
        c0 = j * wc
        # Row butterfly on the VPU, always in f32 (v5e has no bf16 VALU).
        xe = x_ref[:, c0:c0 + wc].astype(jnp.float32)           # even image rows
        xo = x_ref[:, w + c0:w + c0 + wc].astype(jnp.float32)   # odd image rows
        cs = slice(j * half, (j + 1) * half)
        # s -> store LL/HL, then d -> store LH/HH: only one (TR, wc) temp hot at a time.
        s = (xe + xo).astype(dot_dtype)
        o_ref[0, :, cs] = jax.lax.dot(
            s, g_sum, precision=precision,
            preferred_element_type=jnp.float32).astype(out_dt)       # LL
        o_ref[1, :, cs] = jax.lax.dot(
            s, g_diff, precision=precision,
            preferred_element_type=jnp.float32).astype(out_dt)       # HL
        d = (xo - xe).astype(dot_dtype)
        o_ref[2, :, cs] = jax.lax.dot(
            d, g_sum, precision=precision,
            preferred_element_type=jnp.float32).astype(out_dt)       # LH
        o_ref[3, :, cs] = jax.lax.dot(
            d, g_diff, precision=precision,
            preferred_element_type=jnp.float32).astype(out_dt)       # HH


@jax.jit
def dwt(x):
    """Haar DWT, x: (B, C, H, W) -> (B, 4C, H//2, W//2), matching PyTorch dwt_init."""
    B, C, H, W = x.shape
    assert H % 2 == 0 and W % 2 == 0, "H and W must be even"
    Hh, Wh = H // 2, W // 2
    rows = C * Hh

    # Free reshape: row r = c*Hh + hh holds [img row 2hh | img row 2hh+1] of channel c.
    x2 = x.reshape(B, rows, 2 * W)

    if x.dtype == jnp.bfloat16:
        # g entries (0, +-0.5) are exact in bf16: DEFAULT bf16 x bf16 + f32 accum is
        # exact on the g side and 1 MXU pass -> HBM-bound on all generations.
        dot_dtype, precision = jnp.bfloat16, jax.lax.Precision.DEFAULT
    else:
        # f32 path: HIGHEST keeps bit-exactness vs the reference (HIGH is not
        # supported by the Mosaic dot lowering); chunking bounds the MXU cost.
        dot_dtype, precision = jnp.float32, jax.lax.Precision.HIGHEST

    wc = _COL_CHUNK if (W % _COL_CHUNK == 0) else W   # dense fallback for small/odd W
    g = jnp.asarray(_haar_butterfly(wc), dtype=dot_dtype)

    itemsize = jnp.dtype(x.dtype).itemsize
    TR = _pick_row_tile(rows, 2 * W * itemsize, itemsize, B)
    grid = (B, _cdiv(rows, TR))

    out = pl.pallas_call(
        partial(_dwt_kernel, precision=precision, dot_dtype=dot_dtype),
        out_shape=jax.ShapeDtypeStruct((B, 4, rows, Wh), x.dtype),
        grid_spec=pltpu.PrefetchScalarGridSpec(
            num_scalar_prefetch=0,
            grid=grid,
            in_specs=[
                pl.BlockSpec((2, wc, wc // 2), lambda b, r: (0, 0, 0)),   # g: resident
                pl.BlockSpec((None, TR, 2 * W), lambda b, r: (b, r, 0)),  # input rows
            ],
            out_specs=pl.BlockSpec((None, 4, TR, Wh), lambda b, r: (b, 0, r, 0)),
        ),
        compiler_params=pltpu.CompilerParams(
            dimension_semantics=("parallel", "parallel"),
            vmem_limit_bytes=48 * 1024 * 1024,   # per-step footprint ~<=12 MiB; fits v7x's 64 MiB
        ),
    )(g, x2)

    # Free reshape: (B, 4, C*Hh, Wh) -> (B, 4C, Hh, Wh); band-major channels == torch.cat.
    return out.reshape(B, 4 * C, Hh, Wh)


def dwt_ref(x):
    """Pure-JAX reference mirroring the PyTorch dwt_init exactly."""
    x01 = x[:, :, 0::2, :] / 2
    x02 = x[:, :, 1::2, :] / 2
    x1 = x01[:, :, :, 0::2]
    x2 = x02[:, :, :, 0::2]
    x3 = x01[:, :, :, 1::2]
    x4 = x02[:, :, :, 1::2]
    x_ll = x1 + x2 + x3 + x4
    x_hl = -x1 - x2 + x3 + x4
    x_lh = -x1 + x2 - x3 + x4
    x_hh = x1 - x2 - x3 + x4
    return jnp.concatenate([x_ll, x_hl, x_lh, x_hh], axis=1)


if __name__ == "__main__":
    key = jax.random.PRNGKey(0)

    # 1) Base small shape, f32 (dense-butterfly path, Wh < 128 masked stores).
    B, C, H, W = 2, 4, 16, 16
    x = jax.random.normal(key, (B, C, H, W), dtype=jnp.float32)
    y = dwt(x)
    jax.block_until_ready(y)
    y_ref = dwt_ref(x)
    assert y.shape == (B, 4 * C, H // 2, W // 2), y.shape
    assert y.dtype == x.dtype
    assert jnp.allclose(y, y_ref, atol=1e-5, rtol=1e-5), "f32 mismatch vs reference"

    # 2) Column-chunked path (W % 256 == 0, two 256-column chunks), still exact in f32.
    xw = jax.random.normal(jax.random.PRNGKey(1), (1, 1, 4, 512), dtype=jnp.float32)
    yw = dwt(xw)
    jax.block_until_ready(yw)
    assert jnp.allclose(yw, dwt_ref(xw), atol=1e-5, rtol=1e-5), "chunked mismatch"

    # 3) bf16 path (DEFAULT-precision bf16 MXU operands) against the f32 reference.
    xb = x.astype(jnp.bfloat16)
    yb = dwt(xb)
    jax.block_until_ready(yb)
    assert yb.dtype == jnp.bfloat16
    assert jnp.allclose(yb.astype(jnp.float32), dwt_ref(x), atol=5e-2, rtol=5e-2), \
        "bf16 mismatch vs reference"

    print("KERNEL_OK")
</pallas_src>

<mosaic_0001>
module attributes {stable_mosaic.version = 11 : i64} {
  func.func @_dwt_kernel(%arg0: i32, %arg1: i32, %arg2: memref<2x16x8xf32, #tpu.memory_space<vmem>>, %arg3: memref<1x32x32xf32, #tpu.memory_space<vmem>>, %arg4: memref<1x4x32x8xf32, #tpu.memory_space<vmem>>) attributes {dimension_semantics = [#tpu.dimension_semantics<parallel>, #tpu.dimension_semantics<parallel>], iteration_bounds = array<i64: 2, 1>, scalar_prefetch = 0 : i64, scratch_operands = 0 : i64, tpu.core_type = #tpu.core_type<tc>, window_params = [{pipeline_mode = #tpu.pipeline_mode<synchronous>, transform_indices = @transform_0, window_bounds = array<i64: 2, 16, 8>}, {transform_indices = @transform_1, window_bounds = array<i64: 1, 32, 32>}, {transform_indices = @transform_2, window_bounds = array<i64: 1, 4, 32, 8>}]} {
    %c0 = arith.constant 0 : index
    %c0_0 = arith.constant 0 : index
    %c0_1 = arith.constant 0 : index
    %0 = vector.load %arg2[%c0, %c0_0, %c0_1] : memref<2x16x8xf32, #tpu.memory_space<vmem>>, vector<1x16x8xf32>
    %1 = vector.shape_cast %0 : vector<1x16x8xf32> to vector<16x8xf32>
    %c1 = arith.constant 1 : index
    %c0_2 = arith.constant 0 : index
    %c0_3 = arith.constant 0 : index
    %2 = vector.load %arg2[%c1, %c0_2, %c0_3] : memref<2x16x8xf32, #tpu.memory_space<vmem>>, vector<1x16x8xf32>
    %3 = vector.shape_cast %2 : vector<1x16x8xf32> to vector<16x8xf32>
    %c0_4 = arith.constant 0 : index
    %c0_5 = arith.constant 0 : index
    %c0_6 = arith.constant 0 : index
    %4 = vector.load %arg3[%c0_4, %c0_5, %c0_6] : memref<1x32x32xf32, #tpu.memory_space<vmem>>, vector<1x32x16xf32>
    %5 = vector.shape_cast %4 : vector<1x32x16xf32> to vector<32x16xf32>
    %c0_7 = arith.constant 0 : index
    %c0_8 = arith.constant 0 : index
    %c16 = arith.constant 16 : index
    %6 = vector.load %arg3[%c0_7, %c0_8, %c16] : memref<1x32x32xf32, #tpu.memory_space<vmem>>, vector<1x32x16xf32>
    %7 = vector.shape_cast %6 : vector<1x32x16xf32> to vector<32x16xf32>
    %8 = arith.addf %5, %7 : vector<32x16xf32>
    %cst = arith.constant dense<0.000000e+00> : vector<32x8xf32>
    %9 = tpu.matmul %8, %1, %cst {dimension_numbers = #tpu.dot_dimension_numbers<[1], [0], [0], [1], [0, 0, 1, 1], [], []>, precision = #tpu.contract_precision<fp32>} : vector<32x16xf32>, vector<16x8xf32>, vector<32x8xf32> -> vector<32x8xf32>
    %c0_9 = arith.constant 0 : index
    %c0_10 = arith.constant 0 : index
    %c0_11 = arith.constant 0 : index
    %c0_12 = arith.constant 0 : index
    %10 = vector.load %arg4[%c0_9, %c0_10, %c0_11, %c0_12] : memref<1x4x32x8xf32, #tpu.memory_space<vmem>>, vector<1x1x32x8xf32>
    %11 = vector.shape_cast %10 : vector<1x1x32x8xf32> to vector<32x8xf32>
    %12 = vector.shape_cast %9 : vector<32x8xf32> to vector<1x1x32x8xf32>
    tpu.vector_store %arg4[%c0_9, %c0_10, %c0_11, %c0_12], %12 {strides = array<i32>} : memref<1x4x32x8xf32, #tpu.memory_space<vmem>>, vector<1x1x32x8xf32>,
    %cst_13 = arith.constant dense<0.000000e+00> : vector<32x8xf32>
    %13 = tpu.matmul %8, %3, %cst_13 {dimension_numbers = #tpu.dot_dimension_numbers<[1], [0], [0], [1], [0, 0, 1, 1], [], []>, precision = #tpu.contract_precision<fp32>} : vector<32x16xf32>, vector<16x8xf32>, vector<32x8xf32> -> vector<32x8xf32>
    %c0_14 = arith.constant 0 : index
    %c1_15 = arith.constant 1 : index
    %c0_16 = arith.constant 0 : index
    %c0_17 = arith.constant 0 : index
    %14 = vector.load %arg4[%c0_14, %c1_15, %c0_16, %c0_17] : memref<1x4x32x8xf32, #tpu.memory_space<vmem>>, vector<1x1x32x8xf32>
    %15 = vector.shape_cast %14 : vector<1x1x32x8xf32> to vector<32x8xf32>
    %16 = vector.shape_cast %13 : vector<32x8xf32> to vector<1x1x32x8xf32>
    tpu.vector_store %arg4[%c0_14, %c1_15, %c0_16, %c0_17], %16 {strides = array<i32>} : memref<1x4x32x8xf32, #tpu.memory_space<vmem>>, vector<1x1x32x8xf32>,
    %17 = arith.subf %7, %5 : vector<32x16xf32>
    %cst_18 = arith.constant dense<0.000000e+00> : vector<32x8xf32>
    %18 = tpu.matmul %17, %1, %cst_18 {dimension_numbers = #tpu.dot_dimension_numbers<[1], [0], [0], [1], [0, 0, 1, 1], [], []>, precision = #tpu.contract_precision<fp32>} : vector<32x16xf32>, vector<16x8xf32>, vector<32x8xf32> -> vector<32x8xf32>
    %c0_19 = arith.constant 0 : index
    %c2 = arith.constant 2 : index
    %c0_20 = arith.constant 0 : index
    %c0_21 = arith.constant 0 : index
    %19 = vector.load %arg4[%c0_19, %c2, %c0_20, %c0_21] : memref<1x4x32x8xf32, #tpu.memory_space<vmem>>, vector<1x1x32x8xf32>
    %20 = vector.shape_cast %19 : vector<1x1x32x8xf32> to vector<32x8xf32>
    %21 = vector.shape_cast %18 : vector<32x8xf32> to vector<1x1x32x8xf32>
    tpu.vector_store %arg4[%c0_19, %c2, %c0_20, %c0_21], %21 {strides = array<i32>} : memref<1x4x32x8xf32, #tpu.memory_space<vmem>>, vector<1x1x32x8xf32>,
    %cst_22 = arith.constant dense<0.000000e+00> : vector<32x8xf32>
    %22 = tpu.matmul %17, %3, %cst_22 {dimension_numbers = #tpu.dot_dimension_numbers<[1], [0], [0], [1], [0, 0, 1, 1], [], []>, precision = #tpu.contract_precision<fp32>} : vector<32x16xf32>, vector<16x8xf32>, vector<32x8xf32> -> vector<32x8xf32>
    %c0_23 = arith.constant 0 : index
    %c3 = arith.constant 3 : index
    %c0_24 = arith.constant 0 : index
    %c0_25 = arith.constant 0 : index
    %23 = vector.load %arg4[%c0_23, %c3, %c0_24, %c0_25] : memref<1x4x32x8xf32, #tpu.memory_space<vmem>>, vector<1x1x32x8xf32>
    %24 = vector.shape_cast %23 : vector<1x1x32x8xf32> to vector<32x8xf32>
    %25 = vector.shape_cast %22 : vector<32x8xf32> to vector<1x1x32x8xf32>
    tpu.vector_store %arg4[%c0_23, %c3, %c0_24, %c0_25], %25 {strides = array<i32>} : memref<1x4x32x8xf32, #tpu.memory_space<vmem>>, vector<1x1x32x8xf32>,
    return
  }
  func.func @transform_0(%arg0: i32, %arg1: i32) -> (i32, i32, i32) {
    %c0_i32 = arith.constant 0 : i32
    %c0_i32_0 = arith.constant 0 : i32
    %c0_i32_1 = arith.constant 0 : i32
    %c0_i32_2 = arith.constant 0 : i32
    return %c0_i32, %c0_i32_0, %c0_i32_1 : i32, i32, i32
  }
  func.func @transform_1(%arg0: i32, %arg1: i32) -> (i32, i32, i32) {
    %c0_i32 = arith.constant 0 : i32
    %c0_i32_0 = arith.constant 0 : i32
    return %arg0, %arg1, %c0_i32 : i32, i32, i32
  }
  func.func @transform_2(%arg0: i32, %arg1: i32) -> (i32, i32, i32, i32) {
    %c0_i32 = arith.constant 0 : i32
    %c0_i32_0 = arith.constant 0 : i32
    %c0_i32_1 = arith.constant 0 : i32
    return %arg0, %c0_i32, %arg1, %c0_i32_0 : i32, i32, i32, i32
  }
}

</mosaic_0001>

<llo_original>
// kernel: dwt.1
$region0: #{dwt.1}
  #allocation0 [shape = 'u32[]', space=smem, size = 0x4, offset = 0x4, fixed_abs, tag = 'smem constant byte address 0x4 - core index']
  #allocation1 [shape = 'u32[144,128]{1,0:T(1,128)}', space=vmem, size = 0x12000, scoped, tag = 'internal scratch']
  %s0 = inlined_call_operand.vmem [shape: f32[2,16,8], index: 0, kind: input, shape index: {}]
  %s1 = inlined_call_operand.vmem [shape: f32[2,32,32], index: 1, kind: input, shape index: {}]
  %s2 = inlined_call_operand.vmem [shape: f32[2,4,32,8], index: 2, kind: output, shape index: {}]
  %s3 = sld [smem:[#allocation0]]
  $region41: #{dwt.1} parent=0
    _
  %s5 = ssub.s32 1, %s3
  %s6 = scalar_select 0, %s5, %s3
  loop: start=0, step=1, limit=4
  $region2: #{dwt.1} parent=0 // loop_pre_header
    _
  $region3: #{dwt.1} parent=0 // loop_header
    %s8 = sphi 0, %s12
    %p9 = scmp.ge.s32.totalorder %s8, 4
    %s15 = sphi 0, %s27
    %s16 = sphi 0, %s23
    %s17 = sphi 0, %s15
    %s18 = sphi 0, %s16
    %s19 = sphi 0, %s17
    %s20 = sphi 0, %s18
    %s28 = sphi 0, %s28
    %s30 = sphi 0, %s28
    %s31 = sphi 0, %s30
    %s45 = sphi 0, %s31
    %s53 = sphi 0, %s55
    %s56 = sphi 0, %s53
    %s57 = sphi 0, %s56
    %s73 = sphi 0, %s57
    %s81 = sphi 0, %s83
    %s84 = sphi 0, %s81
    %s85 = sphi 0, %s84
    %s101 = sphi 0, %s85
  $region4: #{dwt.1} parent=0 // loop_header_branch
    %11 = sbr.rel (%p9) target = $region8
  $region5: #{dwt.1} parent=0 // loop_body
    %s13 = ssub.s32 %s8, 1
    %s14 = ssub.s32 %s8, 2
    %s21 = sadd.s32 1, %s16
    %p22 = scmp.ge.s32.totalorder %s21, 1
    %s23 = scalar_select %p22, 0, %s21
    %s24 = sadd.s32 1, %s15
    %s25 = scalar_select %p22, %s24, %s15
    %p26 = scmp.ge.s32.totalorder %s25, 2
    %s27 = scalar_select %p26, 0, %s25
    %s29 = sadd.s32 %s28, 1
    %p32 = scmp.eq.s32.totalorder %s8, 1
    %p33 = scmp.ne.s32.totalorder %s28, %s30
    %p34 = scmp.eq.s32.totalorder %s8, 0
    %p35 = por %p33, %p34
    %p36 = scmp.ne.s32.totalorder %s28, %s30
    %p37 = scmp.eq.s32.totalorder %s13, 1
    %p38 = por %p36, %p37
    %p39 = scmp.ne.s32.totalorder %s30, %s31
    %p40 = scmp.eq.s32.totalorder %s13, 0
    %p41 = por %p39, %p40
    %p42 = scmp.ne.s32.totalorder %s30, %s31
    %p43 = scmp.eq.s32.totalorder %s14, 1
    %p44 = por %p42, %p43
    %p46 = scmp.ne.s32.totalorder %s31, %s45
    %p47 = scmp.eq.s32.totalorder %s14, 0
    %p48 = por %p46, %p47
    %s49 = ssub.s32 %s15, %s27
    %s50 = ssub.s32 %s16, %s23
    %s51 = sor.u32 %s49, %s50
    %p52 = scmp.eq.s32.totalorder %s51, 0
    %s54 = sadd.s32 %s53, 1
    %s55 = scalar_select %p52, %s53, %s54
    %p58 = pneg %p52
    %p59 = scmp.eq.s32.totalorder %s8, 1
    %p60 = por %p58, %p59
    %p61 = scmp.ne.s32.totalorder %s53, %s56
    %p62 = scmp.eq.s32.totalorder %s8, 0
    %p63 = por %p61, %p62
    %p64 = scmp.ne.s32.totalorder %s53, %s56
    %p65 = scmp.eq.s32.totalorder %s13, 1
    %p66 = por %p64, %p65
    %p67 = scmp.ne.s32.totalorder %s56, %s57
    %p68 = scmp.eq.s32.totalorder %s13, 0
    %p69 = por %p67, %p68
    %p70 = scmp.ne.s32.totalorder %s56, %s57
    %p71 = scmp.eq.s32.totalorder %s14, 1
    %p72 = por %p70, %p71
    %p74 = scmp.ne.s32.totalorder %s57, %s73
    %p75 = scmp.eq.s32.totalorder %s14, 0
    %p76 = por %p74, %p75
    %s77 = ssub.s32 %s15, %s27
    %s78 = ssub.s32 %s16, %s23
    %s79 = sor.u32 %s77, %s78
    %p80 = scmp.eq.s32.totalorder %s79, 0
    %s82 = sadd.s32 %s81, 1
    %s83 = scalar_select %p80, %s81, %s82
    %p86 = pneg %p80
    %p87 = scmp.eq.s32.totalorder %s8, 1
    %p88 = por %p86, %p87
    %p89 = scmp.ne.s32.totalorder %s81, %s84
    %p90 = scmp.eq.s32.totalorder %s8, 0
    %p91 = por %p89, %p90
    %p92 = scmp.ne.s32.totalorder %s81, %s84
    %p93 = scmp.eq.s32.totalorder %s13, 1
    %p94 = por %p92, %p93
    %p95 = scmp.ne.s32.totalorder %s84, %s85
    %p96 = scmp.eq.s32.totalorder %s13, 0
    %p97 = por %p95, %p96
    %p98 = scmp.ne.s32.totalorder %s84, %s85
    %p99 = scmp.eq.s32.totalorder %s14, 1
    %p100 = por %p98, %p99
    %p102 = scmp.ne.s32.totalorder %s85, %s101
    %p103 = scmp.eq.s32.totalorder %s14, 0
    %p104 = por %p102, %p103
    %p105 = scmp.le.s32.totalorder 1, %s8
    %p106 = scmp.lt.s32.totalorder %s8, 3
    %p107 = pnand %p105, %p106
    %p108 = pneg %p107
    // Predicated region
    $region9: #{dwt.1} parent=5 // pred_check
      _
    $region10: #{dwt.1} parent=5 // pred_check_branch
      %110 = sbr.rel (%p107) target = $region12
    $region11: #{dwt.1} parent=5 // pred_region
      %s111 = ssub.s32 %s8, 1
      // Predicated region
      $region13: #{dwt.1} parent=11 // pred_check
        %p112 = pneg %p41
      $region14: #{dwt.1} parent=11 // pred_check_branch
        %114 = sbr.rel (%p112) target = $region16
      $region15: #{dwt.1} parent=11 // pred_region
        _
      $region16: #{dwt.1} parent=11 // pred_fallthru
        _
    $region12: #{dwt.1} parent=5 // pred_fallthru
      _
    %p115 = scmp.lt.s32.totalorder %s8, 2
    // Predicated region
    $region17: #{dwt.1} parent=5 // pred_check
      %p116 = pneg %p115
    $region18: #{dwt.1} parent=5 // pred_check_branch
      %118 = sbr.rel (%p116) target = $region20
    $region19: #{dwt.1} parent=5 // pred_region
      // Predicated region
      $region21: #{dwt.1} parent=19 // pred_check
        %p119 = pneg %p63
      $region22: #{dwt.1} parent=19 // pred_check_branch
        %121 = sbr.rel (%p119) target = $region24
      $region23: #{dwt.1} parent=19 // pred_region
        %s122 = smul.u32 4, %s16
        %p123 = scmp.lt.s32.totalorder %s15, 1
        %s124 = scalar_select %p123, %s15, 1
        %p125 = scmp.lt.s32.totalorder %s122, 3
        %s126 = scalar_select %p125, %s122, 3
        %s127 = smul.addr %s124, 4
        %s128 = sadd.s32 %s126, %s127
        %s129 = smul.addr %s128, 8
        %s130 = scalar_lea.vmem %s1, %s129
        %s131 = smul.u32 4, %s16
      $region24: #{dwt.1} parent=19 // pred_fallthru
        _
    $region20: #{dwt.1} parent=5 // pred_fallthru
      _
    %p132 = scmp.le.s32.totalorder 1, %s8
    %p133 = scmp.lt.s32.totalorder %s8, 3
    %p134 = pnand %p132, %p133
    %p135 = pneg %p134
    // Predicated region
    $region25: #{dwt.1} parent=5 // pred_check
      _
    $region26: #{dwt.1} parent=5 // pred_check_branch
      %137 = sbr.rel (%p134) target = $region28
    $region27: #{dwt.1} parent=5 // pred_region
      %s138 = ssub.s32 %s8, 1
      %p139 = pneg %p41
      %p140 = pneg %p38
      %s141 = smul.u32 4, %s18
      %p142 = scmp.lt.s32.totalorder %s17, 1
      %s143 = scalar_select %p142, %s17, 1
      %p144 = scmp.lt.s32.totalorder %s141, 3
      %s145 = scalar_select %p144, %s141, 3
      %s146 = smul.addr %s143, 4
      %s147 = sadd.s32 %s145, %s146
      %s148 = smul.addr %s147, 8
      %s149 = scalar_lea.vmem %s1, %s148
      %p150 = pneg %p69
      %p151 = pneg %p66
      %p152 = pneg %p97
      %p153 = pneg %p94
      %s154 = smul.u32 4, %s18
      %p155 = scmp.lt.s32.totalorder %s17, 1
      %s156 = scalar_select %p155, %s17, 1
      %p157 = scmp.lt.s32.totalorder %s154, 3
      %s158 = scalar_select %p157, %s154, 3
      %s159 = smul.addr %s156, 16
      %s160 = sadd.s32 %s158, %s159
      %s161 = smul.addr %s160, 8
      %s162 = scalar_lea.vmem %s2, %s161
      %s163 = smul.u32 4, %s18
      %p164 = scmp.lt.s32.totalorder %s17, 1
      %s165 = scalar_select %p164, %s17, 1
      %p166 = scmp.lt.s32.totalorder %s163, 3
      %s167 = scalar_select %p166, %s163, 3
      %s168 = smul.addr %s165, 4
      %s169 = sadd.s32 %s167, %s168
      %s170 = smul.addr %s169, 8
      %s171 = scalar_lea.vmem %s1, %s170
      %s172 = smul.u32 4, %s18
      %s173 = smul.u32 4, %s18
      %p174 = scmp.lt.s32.totalorder %s17, 1
      %s175 = scalar_select %p174, %s17, 1
      %p176 = scmp.lt.s32.totalorder %s173, 3
      %s177 = scalar_select %p176, %s173, 3
      %s178 = smul.addr %s175, 16
      %s179 = sadd.s32 %s177, %s178
      %s180 = smul.addr %s179, 8
      %s181 = scalar_lea.vmem %s2, %s180
      %s182 = smul.u32 4, %s18
      %v183 = vld [vmem:[%s0] sm:$0xff]
      %v184 = vld [vmem:[%s0 + $0x8] sm:$0xff]
      %s185 = scalar_lea.vmem %s0, 16
      %v186 = vld [vmem:[%s185] sm:$0xff]
      %v187 = vld [vmem:[%s185 + $0x8] sm:$0xff]
      %v188 = vld [vmem:[%s171] sm:$0xff]
      %v189 = vld [vmem:[%s171 + $0x8] sm:$0xff]
      %v190 = vld [vmem:[%s171 + $0x10] sm:$0xff]
      %v191 = vld [vmem:[%s171 + $0x18] sm:$0xff]
      %196 = vrot.lane.b32.xlu0 %v188, 112
      %v197 = vpop.permute.xlu0 %196
      %198 = vrot.lane.b32.xlu0 %v189, 112
      %v199 = vpop.permute.xlu0 %198
      %200 = vrot.lane.b32.xlu0 %v190, 112
      %v201 = vpop.permute.xlu0 %200
      %202 = vrot.lane.b32.xlu0 %v191, 112
      %v203 = vpop.permute.xlu0 %202
      %v208 = vadd.f32 %v188, %v197
      %v209 = vadd.f32 %v189, %v199
      %v210 = vadd.f32 %v190, %v201
      %v211 = vadd.f32 %v191, %v203
      %vm212 = vcmask 130048
      %v214 = vsel %vm212, %v208, 0
      %v217 = vsel %vm212, %v209, 0
      %v220 = vsel %vm212, %v210, 0
      %v223 = vsel %vm212, %v211, 0
      %225 = vmatprep.subr.mxu0 0.0
      %226 = vmatpush1.msra.mxu0 0.0
      %227 = vmatprep.subr.mxu0 0.0
      %228 = vmatpush1.msra.mxu0 0.0
      %229 = vmatprep.subr.mxu0 0.0
      %230 = vmatpush1.msra.mxu0 0.0
      %231 = vmatprep.subr.mxu0 0.0
      %232 = vmatpush1.msra.mxu0 0.0
      %233 = vmatprep.subr.mxu0 0.0
      %234 = vmatpush1.msra.mxu0 0.0
      %235 = vmatprep.subr.mxu0 0.0
      %236 = vmatpush1.msra.mxu0 0.0
      %237 = vmatprep.subr.mxu0 0.0
      %238 = vmatpush1.msra.mxu0 0.0
      %239 = vmatprep.subr.mxu0 0.0
      %240 = vmatpush1.msra.mxu0 0.0
      %241 = vmatprep.subr.mxu0 0.0
      %242 = vmatpush1.msra.mxu0 0.0
      %243 = vmatprep.subr.mxu0 0.0
      %244 = vmatpush1.msra.mxu0 0.0
      %245 = vmatprep.subr.mxu0 0.0
      %246 = vmatpush1.msra.mxu0 0.0
      %247 = vmatprep.subr.mxu0 0.0
      %248 = vmatpush1.msra.mxu0 0.0
      %249 = vmatprep.subr.mxu0 0.0
      %250 = vmatpush1.msra.mxu0 0.0
      %251 = vmatprep.subr.mxu0 0.0
      %252 = vmatpush1.msra.mxu0 0.0
      %253 = vmatprep.subr.mxu0 0.0
      %v254 = vand.u32 %v184, 4294901760
      %255 = vmatpush1.msra.mxu0 %v254
      %256 = vmatprep.subr.mxu0 0.0
      %v257 = vand.u32 %v183, 4294901760
      %258 = vmatpush1.msra.mxu0 %v257
      %259 = vmatprep.subr.mxu0 0.0
      %260 = vmatpush2.msra.mxu0 0.0
      %261 = vmatprep.subr.mxu0 0.0
      %262 = vmatpush2.msra.mxu0 0.0
      %263 = vmatprep.subr.mxu0 0.0
      %264 = vmatpush2.msra.mxu0 0.0
      %265 = vmatprep.subr.mxu0 0.0
      %266 = vmatpush2.msra.mxu0 0.0
      %267 = vmatprep.subr.mxu0 0.0
      %268 = vmatpush2.msra.mxu0 0.0
      %269 = vmatprep.subr.mxu0 0.0
      %270 = vmatpush2.msra.mxu0 0.0
      %271 = vmatprep.subr.mxu0 0.0
      %272 = vmatpush2.msra.mxu0 0.0
      %273 = vmatprep.subr.mxu0 0.0
      %274 = vmatpush2.msra.mxu0 0.0
      %275 = vmatprep.subr.mxu0 0.0
      %276 = vmatpush2.msra.mxu0 0.0
      %277 = vmatprep.subr.mxu0 0.0
      %278 = vmatpush2.msra.mxu0 0.0
      %279 = vmatprep.subr.mxu0 0.0
      %280 = vmatpush2.msra.mxu0 0.0
      %281 = vmatprep.subr.mxu0 0.0
      %282 = vmatpush2.msra.mxu0 0.0
      %283 = vmatprep.subr.mxu0 0.0
      %284 = vmatpush2.msra.mxu0 0.0
      %285 = vmatprep.subr.mxu0 0.0
      %286 = vmatpush2.msra.mxu0 0.0
      %287 = vmatprep.subr.mxu0 0.0
      %288 = vmatpush2.msra.mxu0 0.0
      %289 = vmatprep.subr.mxu0 0.0
      %290 = vmatpush2.msra.mxu0 0.0
      %291 = vmatprep.mubr.f32.mxu0 0.0
      %v292 = vand.u32 %v214, 4294901760
      %v293 = vsub.f32 %v214, %v292
      %v294 = vand.u32 %v293, 4294901760
      %v295 = vsub.f32 %v293, %v294
      %v296 = vand.u32 %v295, 4294901760
      %297 = vmatmul.mubr.f32.gmra.mxu0 %v296
      %v298 = vpop.f32.mrf.mxu0
      %v299 = vadd.f32 0.0, %v298
      %v300 = vpop.f32.mrf.mxu0
      %301 = vmatprep.mubr.f32.mxu0 0.0
      %v302 = vand.u32 %v217, 4294901760
      %v303 = vsub.f32 %v217, %v302
      %v304 = vand.u32 %v303, 4294901760
      %v305 = vsub.f32 %v303, %v304
      %v306 = vand.u32 %v305, 4294901760
      %307 = vmatmul.mubr.f32.gmra.mxu0 %v306
      %v308 = vpop.f32.mrf.mxu0
      %v309 = vadd.f32 0.0, %v308
      %v310 = vpop.f32.mrf.mxu0
      %311 = vmatprep.mubr.f32.mxu0 0.0
      %v312 = vand.u32 %v220, 4294901760
      %v313 = vsub.f32 %v220, %v312
      %v314 = vand.u32 %v313, 4294901760
      %v315 = vsub.f32 %v313, %v314
      %v316 = vand.u32 %v315, 4294901760
      %317 = vmatmul.mubr.f32.gmra.mxu0 %v316
      %v318 = vpop.f32.mrf.mxu0
      %v319 = vadd.f32 0.0, %v318
      %v320 = vpop.f32.mrf.mxu0
      %321 = vmatprep.mubr.f32.mxu0 0.0
      %v322 = vand.u32 %v223, 4294901760
      %v323 = vsub.f32 %v223, %v322
      %v324 = vand.u32 %v323, 4294901760
      %v325 = vsub.f32 %v323, %v324
      %v326 = vand.u32 %v325, 4294901760
      %327 = vmatmul.mubr.f32.gmra.mxu0 %v326
      %v328 = vpop.f32.mrf.mxu0
      %v329 = vadd.f32 0.0, %v328
      %v330 = vpop.f32.mrf.mxu0
      %331 = vdwg.mxu0
      %332 = vmatprep.subr.mxu0 0.0
      %333 = vmatpush1.msra.mxu0 0.0
      %334 = vmatprep.subr.mxu0 0.0
      %335 = vmatpush1.msra.mxu0 0.0
      %336 = vmatprep.subr.mxu0 0.0
      %337 = vmatpush1.msra.mxu0 0.0
      %338 = vmatprep.subr.mxu0 0.0
      %339 = vmatpush1.msra.mxu0 0.0
      %340 = vmatprep.subr.mxu0 0.0
      %341 = vmatpush1.msra.mxu0 0.0
      %342 = vmatprep.subr.mxu0 0.0
      %343 = vmatpush1.msra.mxu0 0.0
      %344 = vmatprep.subr.mxu0 0.0
      %345 = vmatpush1.msra.mxu0 0.0
      %346 = vmatprep.subr.mxu0 0.0
      %347 = vmatpush1.msra.mxu0 0.0
      %348 = vmatprep.subr.mxu0 0.0
      %349 = vmatpush1.msra.mxu0 0.0
      %350 = vmatprep.subr.mxu0 0.0
      %351 = vmatpush1.msra.mxu0 0.0
      %352 = vmatprep.subr.mxu0 0.0
      %353 = vmatpush1.msra.mxu0 0.0
      %354 = vmatprep.subr.mxu0 0.0
      %355 = vmatpush1.msra.mxu0 0.0
      %356 = vmatprep.subr.mxu0 0.0
      %357 = vmatpush1.msra.mxu0 0.0
      %358 = vmatprep.subr.mxu0 0.0
      %359 = vmatpush1.msra.mxu0 0.0
      %360 = vmatprep.subr.mxu0 0.0
      %v361 = vand.u32 %v184, 4294901760
      %v362 = vsub.f32 %v184, %v361
      %v363 = vand.u32 %v362, 4294901760
      %v364 = vsub.f32 %v362, %v363
      %v365 = vand.u32 %v364, 4294901760
      %366 = vmatpush1.msra.mxu0 %v365
      %367 = vmatprep.subr.mxu0 0.0
      %v368 = vand.u32 %v183, 4294901760
      %v369 = vsub.f32 %v183, %v368
      %v370 = vand.u32 %v369, 4294901760
      %v371 = vsub.f32 %v369, %v370
      %v372 = vand.u32 %v371, 4294901760
      %373 = vmatpush1.msra.mxu0 %v372
      %374 = vmatprep.subr.mxu0 0.0
      %375 = vmatpush2.msra.mxu0 0.0
      %376 = vmatprep.subr.mxu0 0.0
      %377 = vmatpush2.msra.mxu0 0.0
      %378 = vmatprep.subr.mxu0 0.0
      %379 = vmatpush2.msra.mxu0 0.0
      %380 = vmatprep.subr.mxu0 0.0
      %381 = vmatpush2.msra.mxu0 0.0
      %382 = vmatprep.subr.mxu0 0.0
      %383 = vmatpush2.msra.mxu0 0.0
      %384 = vmatprep.subr.mxu0 0.0
      %385 = vmatpush2.msra.mxu0 0.0
      %386 = vmatprep.subr.mxu0 0.0
      %387 = vmatpush2.msra.mxu0 0.0
      %388 = vmatprep.subr.mxu0 0.0
      %389 = vmatpush2.msra.mxu0 0.0
      %390 = vmatprep.subr.mxu0 0.0
      %391 = vmatpush2.msra.mxu0 0.0
      %392 = vmatprep.subr.mxu0 0.0
      %393 = vmatpush2.msra.mxu0 0.0
      %394 = vmatprep.subr.mxu0 0.0
      %395 = vmatpush2.msra.mxu0 0.0
      %396 = vmatprep.subr.mxu0 0.0
      %397 = vmatpush2.msra.mxu0 0.0
      %398 = vmatprep.subr.mxu0 0.0
      %399 = vmatpush2.msra.mxu0 0.0
      %400 = vmatprep.subr.mxu0 0.0
      %401 = vmatpush2.msra.mxu0 0.0
      %402 = vmatprep.subr.mxu0 0.0
      %403 = vmatpush2.msra.mxu0 0.0
      %404 = vmatprep.subr.mxu0 0.0
      %405 = vmatpush2.msra.mxu0 0.0
      %406 = vmatprep.mubr.f32.mxu0 0.0
      %v407 = vand.u32 %v214, 4294901760
      %408 = vmatmul.mubr.f32.gmra.mxu0 %v407
      %v409 = vpop.f32.mrf.mxu0
      %v410 = vadd.f32 %v299, %v409
      %v411 = vpop.f32.mrf.mxu0
      %412 = vmatprep.mubr.f32.mxu0 0.0
      %v413 = vand.u32 %v217, 4294901760
      %414 = vmatmul.mubr.f32.gmra.mxu0 %v413
      %v415 = vpop.f32.mrf.mxu0
      %v416 = vadd.f32 %v309, %v415
      %v417 = vpop.f32.mrf.mxu0
      %418 = vmatprep.mubr.f32.mxu0 0.0
      %v419 = vand.u32 %v220, 4294901760
      %420 = vmatmul.mubr.f32.gmra.mxu0 %v419
      %v421 = vpop.f32.mrf.mxu0
      %v422 = vadd.f32 %v319, %v421
      %v423 = vpop.f32.mrf.mxu0
      %424 = vmatprep.mubr.f32.mxu0 0.0
      %v425 = vand.u32 %v223, 4294901760
      %426 = vmatmul.mubr.f32.gmra.mxu0 %v425
      %v427 = vpop.f32.mrf.mxu0
      %v428 = vadd.f32 %v329, %v427
      %v429 = vpop.f32.mrf.mxu0
      %430 = vdwg.mxu0
      %431 = vmatprep.subr.mxu0 0.0
      %432 = vmatpush1.msra.mxu0 0.0
      %433 = vmatprep.subr.mxu0 0.0
      %434 = vmatpush1.msra.mxu0 0.0
      %435 = vmatprep.subr.mxu0 0.0
      %436 = vmatpush1.msra.mxu0 0.0
      %437 = vmatprep.subr.mxu0 0.0
      %438 = vmatpush1.msra.mxu0 0.0
      %439 = vmatprep.subr.mxu0 0.0
      %440 = vmatpush1.msra.mxu0 0.0
      %441 = vmatprep.subr.mxu0 0.0
      %442 = vmatpush1.msra.mxu0 0.0
      %443 = vmatprep.subr.mxu0 0.0
      %444 = vmatpush1.msra.mxu0 0.0
      %445 = vmatprep.subr.mxu0 0.0
      %446 = vmatpush1.msra.mxu0 0.0
      %447 = vmatprep.subr.mxu0 0.0
      %448 = vmatpush1.msra.mxu0 0.0
      %449 = vmatprep.subr.mxu0 0.0
      %450 = vmatpush1.msra.mxu0 0.0
      %451 = vmatprep.subr.mxu0 0.0
      %452 = vmatpush1.msra.mxu0 0.0
      %453 = vmatprep.subr.mxu0 0.0
      %454 = vmatpush1.msra.mxu0 0.0
      %455 = vmatprep.subr.mxu0 0.0
      %456 = vmatpush1.msra.mxu0 0.0
      %457 = vmatprep.subr.mxu0 0.0
      %458 = vmatpush1.msra.mxu0 0.0
      %459 = vmatprep.subr.mxu0 0.0
      %v460 = vand.u32 %v184, 4294901760
      %v461 = vsub.f32 %v184, %v460
      %462 = vmatpush1.msra.mxu0 %v461
      %463 = vmatprep.subr.mxu0 0.0
      %v464 = vand.u32 %v183, 4294901760
      %v465 = vsub.f32 %v183, %v464
      %466 = vmatpush1.msra.mxu0 %v465
      %467 = vmatprep.subr.mxu0 0.0
      %468 = vmatpush2.msra.mxu0 0.0
      %469 = vmatprep.subr.mxu0 0.0
      %470 = vmatpush2.msra.mxu0 0.0
      %471 = vmatprep.subr.mxu0 0.0
      %472 = vmatpush2.msra.mxu0 0.0
      %473 = vmatprep.subr.mxu0 0.0
      %474 = vmatpush2.msra.mxu0 0.0
      %475 = vmatprep.subr.mxu0 0.0
      %476 = vmatpush2.msra.mxu0 0.0
      %477 = vmatprep.subr.mxu0 0.0
      %478 = vmatpush2.msra.mxu0 0.0
      %479 = vmatprep.subr.mxu0 0.0
      %480 = vmatpush2.msra.mxu0 0.0
      %481 = vmatprep.subr.mxu0 0.0
      %482 = vmatpush2.msra.mxu0 0.0
      %483 = vmatprep.subr.mxu0 0.0
      %484 = vmatpush2.msra.mxu0 0.0
      %485 = vmatprep.subr.mxu0 0.0
      %486 = vmatpush2.msra.mxu0 0.0
      %487 = vmatprep.subr.mxu0 0.0
      %488 = vmatpush2.msra.mxu0 0.0
      %489 = vmatprep.subr.mxu0 0.0
      %490 = vmatpush2.msra.mxu0 0.0
      %491 = vmatprep.subr.mxu0 0.0
      %492 = vmatpush2.msra.mxu0 0.0
      %493 = vmatprep.subr.mxu0 0.0
      %494 = vmatpush2.msra.mxu0 0.0
      %495 = vmatprep.subr.mxu0 0.0
      %496 = vmatpush2.msra.mxu0 0.0
      %497 = vmatprep.subr.mxu0 0.0
      %498 = vmatpush2.msra.mxu0 0.0
      %499 = vmatprep.mubr.f32.mxu0 0.0
      %v500 = vand.u32 %v214, 4294901760
      %v501 = vsub.f32 %v214, %v500
      %502 = vmatmul.mubr.f32.gmra.mxu0 %v501
      %v503 = vpop.f32.mrf.mxu0
      %v504 = vadd.f32 %v410, %v503
      %v505 = vpop.f32.mrf.mxu0
      %506 = vmatprep.mubr.f32.mxu0 0.0
      %v507 = vand.u32 %v217, 4294901760
      %v508 = vsub.f32 %v217, %v507
      %509 = vmatmul.mubr.f32.gmra.mxu0 %v508
      %v510 = vpop.f32.mrf.mxu0
      %v511 = vadd.f32 %v416, %v510
      %v512 = vpop.f32.mrf.mxu0
      %513 = vmatprep.mubr.f32.mxu0 0.0
      %v514 = vand.u32 %v220, 4294901760
      %v515 = vsub.f32 %v220, %v514
      %516 = vmatmul.mubr.f32.gmra.mxu0 %v515
      %v517 = vpop.f32.mrf.mxu0
      %v518 = vadd.f32 %v422, %v517
      %v519 = vpop.f32.mrf.mxu0
      %520 = vmatprep.mubr.f32.mxu0 0.0
      %v521 = vand.u32 %v223, 4294901760
      %v522 = vsub.f32 %v223, %v521
      %523 = vmatmul.mubr.f32.gmra.mxu0 %v522
      %v524 = vpop.f32.mrf.mxu0
      %v525 = vadd.f32 %v428, %v524
      %v526 = vpop.f32.mrf.mxu0
      %527 = vdwg.mxu0
      %528 = vmatprep.subr.mxu0 0.0
      %529 = vmatpush1.msra.mxu0 0.0
      %530 = vmatprep.subr.mxu0 0.0
      %531 = vmatpush1.msra.mxu0 0.0
      %532 = vmatprep.subr.mxu0 0.0
      %533 = vmatpush1.msra.mxu0 0.0
      %534 = vmatprep.subr.mxu0 0.0
      %535 = vmatpush1.msra.mxu0 0.0
      %536 = vmatprep.subr.mxu0 0.0
      %537 = vmatpush1.msra.mxu0 0.0
      %538 = vmatprep.subr.mxu0 0.0
      %539 = vmatpush1.msra.mxu0 0.0
      %540 = vmatprep.subr.mxu0 0.0
      %541 = vmatpush1.msra.mxu0 0.0
      %542 = vmatprep.subr.mxu0 0.0
      %543 = vmatpush1.msra.mxu0 0.0
      %544 = vmatprep.subr.mxu0 0.0
      %545 = vmatpush1.msra.mxu0 0.0
      %546 = vmatprep.subr.mxu0 0.0
      %547 = vmatpush1.msra.mxu0 0.0
      %548 = vmatprep.subr.mxu0 0.0
      %549 = vmatpush1.msra.mxu0 0.0
      %550 = vmatprep.subr.mxu0 0.0
      %551 = vmatpush1.msra.mxu0 0.0
      %552 = vmatprep.subr.mxu0 0.0
      %553 = vmatpush1.msra.mxu0 0.0
      %554 = vmatprep.subr.mxu0 0.0
      %555 = vmatpush1.msra.mxu0 0.0
      %556 = vmatprep.subr.mxu0 0.0
      %v557 = vand.u32 %v184, 4294901760
      %558 = vmatpush1.msra.mxu0 %v557
      %559 = vmatprep.subr.mxu0 0.0
      %v560 = vand.u32 %v183, 4294901760
      %561 = vmatpush1.msra.mxu0 %v560
      %562 = vmatprep.subr.mxu0 0.0
      %563 = vmatpush2.msra.mxu0 0.0
      %564 = vmatprep.subr.mxu0 0.0
      %565 = vmatpush2.msra.mxu0 0.0
      %566 = vmatprep.subr.mxu0 0.0
      %567 = vmatpush2.msra.mxu0 0.0
      %568 = vmatprep.subr.mxu0 0.0
      %569 = vmatpush2.msra.mxu0 0.0
      %570 = vmatprep.subr.mxu0 0.0
      %571 = vmatpush2.msra.mxu0 0.0
      %572 = vmatprep.subr.mxu0 0.0
      %573 = vmatpush2.msra.mxu0 0.0
      %574 = vmatprep.subr.mxu0 0.0
      %575 = vmatpush2.msra.mxu0 0.0
      %576 = vmatprep.subr.mxu0 0.0
      %577 = vmatpush2.msra.mxu0 0.0
      %578 = vmatprep.subr.mxu0 0.0
      %579 = vmatpush2.msra.mxu0 0.0
      %580 = vmatprep.subr.mxu0 0.0
      %581 = vmatpush2.msra.mxu0 0.0
      %582 = vmatprep.subr.mxu0 0.0
      %583 = vmatpush2.msra.mxu0 0.0
      %584 = vmatprep.subr.mxu0 0.0
      %585 = vmatpush2.msra.mxu0 0.0
      %586 = vmatprep.subr.mxu0 0.0
      %587 = vmatpush2.msra.mxu0 0.0
      %588 = vmatprep.subr.mxu0 0.0
      %589 = vmatpush2.msra.mxu0 0.0
      %590 = vmatprep.subr.mxu0 0.0
      %591 = vmatpush2.msra.mxu0 0.0
      %592 = vmatprep.subr.mxu0 0.0
      %593 = vmatpush2.msra.mxu0 0.0
      %594 = vmatprep.mubr.f32.mxu0 0.0
      %v595 = vand.u32 %v214, 4294901760
      %v596 = vsub.f32 %v214, %v595
      %v597 = vand.u32 %v596, 4294901760
      %598 = vmatmul.mubr.f32.gmra.mxu0 %v597
      %v599 = vpop.f32.mrf.mxu0
      %v600 = vadd.f32 %v504, %v599
      %v601 = vpop.f32.mrf.mxu0
      %602 = vmatprep.mubr.f32.mxu0 0.0
      %v603 = vand.u32 %v217, 4294901760
      %v604 = vsub.f32 %v217, %v603
      %v605 = vand.u32 %v604, 4294901760
      %606 = vmatmul.mubr.f32.gmra.mxu0 %v605
      %v607 = vpop.f32.mrf.mxu0
      %v608 = vadd.f32 %v511, %v607
      %v609 = vpop.f32.mrf.mxu0
      %610 = vmatprep.mubr.f32.mxu0 0.0
      %v611 = vand.u32 %v220, 4294901760
      %v612 = vsub.f32 %v220, %v611
      %v613 = vand.u32 %v612, 4294901760
      %614 = vmatmul.mubr.f32.gmra.mxu0 %v613
      %v615 = vpop.f32.mrf.mxu0
      %v616 = vadd.f32 %v518, %v615
      %v617 = vpop.f32.mrf.mxu0
      %618 = vmatprep.mubr.f32.mxu0 0.0
      %v619 = vand.u32 %v223, 4294901760
      %v620 = vsub.f32 %v223, %v619
      %v621 = vand.u32 %v620, 4294901760
      %622 = vmatmul.mubr.f32.gmra.mxu0 %v621
      %v623 = vpop.f32.mrf.mxu0
      %v624 = vadd.f32 %v525, %v623
      %v625 = vpop.f32.mrf.mxu0
      %626 = vdwg.mxu0
      %627 = vmatprep.subr.mxu0 0.0
      %628 = vmatpush1.msra.mxu0 0.0
      %629 = vmatprep.subr.mxu0 0.0
      %630 = vmatpush1.msra.mxu0 0.0
      %631 = vmatprep.subr.mxu0 0.0
      %632 = vmatpush1.msra.mxu0 0.0
      %633 = vmatprep.subr.mxu0 0.0
      %634 = vmatpush1.msra.mxu0 0.0
      %635 = vmatprep.subr.mxu0 0.0
      %636 = vmatpush1.msra.mxu0 0.0
      %637 = vmatprep.subr.mxu0 0.0
      %638 = vmatpush1.msra.mxu0 0.0
      %639 = vmatprep.subr.mxu0 0.0
      %640 = vmatpush1.msra.mxu0 0.0
      %641 = vmatprep.subr.mxu0 0.0
      %642 = vmatpush1.msra.mxu0 0.0
      %643 = vmatprep.subr.mxu0 0.0
      %644 = vmatpush1.msra.mxu0 0.0
      %645 = vmatprep.subr.mxu0 0.0
      %646 = vmatpush1.msra.mxu0 0.0
      %647 = vmatprep.subr.mxu0 0.0
      %648 = vmatpush1.msra.mxu0 0.0
      %649 = vmatprep.subr.mxu0 0.0
      %650 = vmatpush1.msra.mxu0 0.0
      %651 = vmatprep.subr.mxu0 0.0
      %652 = vmatpush1.msra.mxu0 0.0
      %653 = vmatprep.subr.mxu0 0.0
      %654 = vmatpush1.msra.mxu0 0.0
      %655 = vmatprep.subr.mxu0 0.0
      %v656 = vand.u32 %v184, 4294901760
      %v657 = vsub.f32 %v184, %v656
      %v658 = vand.u32 %v657, 4294901760
      %659 = vmatpush1.msra.mxu0 %v658
      %660 = vmatprep.subr.mxu0 0.0
      %v661 = vand.u32 %v183, 4294901760
      %v662 = vsub.f32 %v183, %v661
      %v663 = vand.u32 %v662, 4294901760
      %664 = vmatpush1.msra.mxu0 %v663
      %665 = vmatprep.subr.mxu0 0.0
      %666 = vmatpush2.msra.mxu0 0.0
      %667 = vmatprep.subr.mxu0 0.0
      %668 = vmatpush2.msra.mxu0 0.0
      %669 = vmatprep.subr.mxu0 0.0
      %670 = vmatpush2.msra.mxu0 0.0
      %671 = vmatprep.subr.mxu0 0.0
      %672 = vmatpush2.msra.mxu0 0.0
      %673 = vmatprep.subr.mxu0 0.0
      %674 = vmatpush2.msra.mxu0 0.0
      %675 = vmatprep.subr.mxu0 0.0
      %676 = vmatpush2.msra.mxu0 0.0
      %677 = vmatprep.subr.mxu0 0.0
      %678 = vmatpush2.msra.mxu0 0.0
      %679 = vmatprep.subr.mxu0 0.0
      %680 = vmatpush2.msra.mxu0 0.0
      %681 = vmatprep.subr.mxu0 0.0
      %682 = vmatpush2.msra.mxu0 0.0
      %683 = vmatprep.subr.mxu0 0.0
      %684 = vmatpush2.msra.mxu0 0.0
      %685 = vmatprep.subr.mxu0 0.0
      %686 = vmatpush2.msra.mxu0 0.0
      %687 = vmatprep.subr.mxu0 0.0
      %688 = vmatpush2.msra.mxu0 0.0
      %689 = vmatprep.subr.mxu0 0.0
      %690 = vmatpush2.msra.mxu0 0.0
      %691 = vmatprep.subr.mxu0 0.0
      %692 = vmatpush2.msra.mxu0 0.0
      %693 = vmatprep.subr.mxu0 0.0
      %694 = vmatpush2.msra.mxu0 0.0
      %695 = vmatprep.subr.mxu0 0.0
      %696 = vmatpush2.msra.mxu0 0.0
      %697 = vmatprep.mubr.f32.mxu0 0.0
      %v698 = vand.u32 %v214, 4294901760
      %699 = vmatmul.mubr.f32.gmra.mxu0 %v698
      %v700 = vpop.f32.mrf.mxu0
      %v701 = vadd.f32 %v600, %v700
      %v702 = vpop.f32.mrf.mxu0
      %703 = vmatprep.mubr.f32.mxu0 0.0
      %v704 = vand.u32 %v217, 4294901760
      %705 = vmatmul.mubr.f32.gmra.mxu0 %v704
      %v706 = vpop.f32.mrf.mxu0
      %v707 = vadd.f32 %v608, %v706
      %v708 = vpop.f32.mrf.mxu0
      %709 = vmatprep.mubr.f32.mxu0 0.0
      %v710 = vand.u32 %v220, 4294901760
      %711 = vmatmul.mubr.f32.gmra.mxu0 %v710
      %v712 = vpop.f32.mrf.mxu0
      %v713 = vadd.f32 %v616, %v712
      %v714 = vpop.f32.mrf.mxu0
      %715 = vmatprep.mubr.f32.mxu0 0.0
      %v716 = vand.u32 %v223, 4294901760
      %717 = vmatmul.mubr.f32.gmra.mxu0 %v716
      %v718 = vpop.f32.mrf.mxu0
      %v719 = vadd.f32 %v624, %v718
      %v720 = vpop.f32.mrf.mxu0
      %721 = vdwg.mxu0
      %722 = vmatprep.subr.mxu0 0.0
      %723 = vmatpush1.msra.mxu0 0.0
      %724 = vmatprep.subr.mxu0 0.0
      %725 = vmatpush1.msra.mxu0 0.0
      %726 = vmatprep.subr.mxu0 0.0
      %727 = vmatpush1.msra.mxu0 0.0
      %728 = vmatprep.subr.mxu0 0.0
      %729 = vmatpush1.msra.mxu0 0.0
      %730 = vmatprep.subr.mxu0 0.0
      %731 = vmatpush1.msra.mxu0 0.0
      %732 = vmatprep.subr.mxu0 0.0
      %733 = vmatpush1.msra.mxu0 0.0
      %734 = vmatprep.subr.mxu0 0.0
      %735 = vmatpush1.msra.mxu0 0.0
      %736 = vmatprep.subr.mxu0 0.0
      %737 = vmatpush1.msra.mxu0 0.0
      %738 = vmatprep.subr.mxu0 0.0
      %739 = vmatpush1.msra.mxu0 0.0
      %740 = vmatprep.subr.mxu0 0.0
      %741 = vmatpush1.msra.mxu0 0.0
      %742 = vmatprep.subr.mxu0 0.0
      %743 = vmatpush1.msra.mxu0 0.0
      %744 = vmatprep.subr.mxu0 0.0
      %745 = vmatpush1.msra.mxu0 0.0
      %746 = vmatprep.subr.mxu0 0.0
      %747 = vmatpush1.msra.mxu0 0.0
      %748 = vmatprep.subr.mxu0 0.0
      %749 = vmatpush1.msra.mxu0 0.0
      %750 = vmatprep.subr.mxu0 0.0
      %v751 = vand.u32 %v184, 4294901760
      %752 = vmatpush1.msra.mxu0 %v751
      %753 = vmatprep.subr.mxu0 0.0
      %v754 = vand.u32 %v183, 4294901760
      %755 = vmatpush1.msra.mxu0 %v754
      %756 = vmatprep.subr.mxu0 0.0
      %757 = vmatpush2.msra.mxu0 0.0
      %758 = vmatprep.subr.mxu0 0.0
      %759 = vmatpush2.msra.mxu0 0.0
      %760 = vmatprep.subr.mxu0 0.0
      %761 = vmatpush2.msra.mxu0 0.0
      %762 = vmatprep.subr.mxu0 0.0
      %763 = vmatpush2.msra.mxu0 0.0
      %764 = vmatprep.subr.mxu0 0.0
      %765 = vmatpush2.msra.mxu0 0.0
      %766 = vmatprep.subr.mxu0 0.0
      %767 = vmatpush2.msra.mxu0 0.0
      %768 = vmatprep.subr.mxu0 0.0
      %769 = vmatpush2.msra.mxu0 0.0
      %770 = vmatprep.subr.mxu0 0.0
      %771 = vmatpush2.msra.mxu0 0.0
      %772 = vmatprep.subr.mxu0 0.0
      %773 = vmatpush2.msra.mxu0 0.0
      %774 = vmatprep.subr.mxu0 0.0
      %775 = vmatpush2.msra.mxu0 0.0
      %776 = vmatprep.subr.mxu0 0.0
      %777 = vmatpush2.msra.mxu0 0.0
      %778 = vmatprep.subr.mxu0 0.0
      %779 = vmatpush2.msra.mxu0 0.0
      %780 = vmatprep.subr.mxu0 0.0
      %781 = vmatpush2.msra.mxu0 0.0
      %782 = vmatprep.subr.mxu0 0.0
      %783 = vmatpush2.msra.mxu0 0.0
      %784 = vmatprep.subr.mxu0 0.0
      %785 = vmatpush2.msra.mxu0 0.0
      %786 = vmatprep.subr.mxu0 0.0
      %787 = vmatpush2.msra.mxu0 0.0
      %788 = vmatprep.mubr.f32.mxu0 0.0
      %v789 = vand.u32 %v214, 4294901760
      %790 = vmatmul.mubr.f32.gmra.mxu0 %v789
      %v791 = vpop.f32.mrf.mxu0
      %v792 = vadd.f32 %v701, %v791
      %v793 = vpop.f32.mrf.mxu0
      %794 = vmatprep.mubr.f32.mxu0 0.0
      %v795 = vand.u32 %v217, 4294901760
      %796 = vmatmul.mubr.f32.gmra.mxu0 %v795
      %v797 = vpop.f32.mrf.mxu0
      %v798 = vadd.f32 %v707, %v797
      %v799 = vpop.f32.mrf.mxu0
      %800 = vmatprep.mubr.f32.mxu0 0.0
      %v801 = vand.u32 %v220, 4294901760
      %802 = vmatmul.mubr.f32.gmra.mxu0 %v801
      %v803 = vpop.f32.mrf.mxu0
      %v804 = vadd.f32 %v713, %v803
      %v805 = vpop.f32.mrf.mxu0
      %806 = vmatprep.mubr.f32.mxu0 0.0
      %v807 = vand.u32 %v223, 4294901760
      %808 = vmatmul.mubr.f32.gmra.mxu0 %v807
      %v809 = vpop.f32.mrf.mxu0
      %v810 = vadd.f32 %v719, %v809
      %v811 = vpop.f32.mrf.mxu0
      %812 = vdwg.mxu0
      %vm813 = vcmask 64512
      %814 = vst.msk [vmem:[%s181] sm:$0xff] %vm813, %v792
      %815 = vst.msk [vmem:[%s181 + $0x8] sm:$0xff] %vm813, %v798
      %816 = vst.msk [vmem:[%s181 + $0x10] sm:$0xff] %vm813, %v804
      %817 = vst.msk [vmem:[%s181 + $0x18] sm:$0xff] %vm813, %v810
      %818 = vmatprep.subr.mxu0 0.0
      %819 = vmatpush1.msra.mxu0 0.0
      %820 = vmatprep.subr.mxu0 0.0
      %821 = vmatpush1.msra.mxu0 0.0
      %822 = vmatprep.subr.mxu0 0.0
      %823 = vmatpush1.msra.mxu0 0.0
      %824 = vmatprep.subr.mxu0 0.0
      %825 = vmatpush1.msra.mxu0 0.0
      %826 = vmatprep.subr.mxu0 0.0
      %827 = vmatpush1.msra.mxu0 0.0
      %828 = vmatprep.subr.mxu0 0.0
      %829 = vmatpush1.msra.mxu0 0.0
      %830 = vmatprep.subr.mxu0 0.0
      %831 = vmatpush1.msra.mxu0 0.0
      %832 = vmatprep.subr.mxu0 0.0
      %833 = vmatpush1.msra.mxu0 0.0
      %834 = vmatprep.subr.mxu0 0.0
      %835 = vmatpush1.msra.mxu0 0.0
      %836 = vmatprep.subr.mxu0 0.0
      %837 = vmatpush1.msra.mxu0 0.0
      %838 = vmatprep.subr.mxu0 0.0
      %839 = vmatpush1.msra.mxu0 0.0
      %840 = vmatprep.subr.mxu0 0.0
      %841 = vmatpush1.msra.mxu0 0.0
      %842 = vmatprep.subr.mxu0 0.0
      %843 = vmatpush1.msra.mxu0 0.0
      %844 = vmatprep.subr.mxu0 0.0
      %845 = vmatpush1.msra.mxu0 0.0
      %846 = vmatprep.subr.mxu0 0.0
      %v847 = vand.u32 %v187, 4294901760
      %848 = vmatpush1.msra.mxu0 %v847
      %849 = vmatprep.subr.mxu0 0.0
      %v850 = vand.u32 %v186, 4294901760
      %851 = vmatpush1.msra.mxu0 %v850
      %852 = vmatprep.subr.mxu0 0.0
      %853 = vmatpush2.msra.mxu0 0.0
      %854 = vmatprep.subr.mxu0 0.0
      %855 = vmatpush2.msra.mxu0 0.0
      %856 = vmatprep.subr.mxu0 0.0
      %857 = vmatpush2.msra.mxu0 0.0
      %858 = vmatprep.subr.mxu0 0.0
      %859 = vmatpush2.msra.mxu0 0.0
      %860 = vmatprep.subr.mxu0 0.0
      %861 = vmatpush2.msra.mxu0 0.0
      %862 = vmatprep.subr.mxu0 0.0
      %863 = vmatpush2.msra.mxu0 0.0
      %864 = vmatprep.subr.mxu0 0.0
      %865 = vmatpush2.msra.mxu0 0.0
      %866 = vmatprep.subr.mxu0 0.0
      %867 = vmatpush2.msra.mxu0 0.0
      %868 = vmatprep.subr.mxu0 0.0
      %869 = vmatpush2.msra.mxu0 0.0
      %870 = vmatprep.subr.mxu0 0.0
      %871 = vmatpush2.msra.mxu0 0.0
      %872 = vmatprep.subr.mxu0 0.0
      %873 = vmatpush2.msra.mxu0 0.0
      %874 = vmatprep.subr.mxu0 0.0
      %875 = vmatpush2.msra.mxu0 0.0
      %876 = vmatprep.subr.mxu0 0.0
      %877 = vmatpush2.msra.mxu0 0.0
      %878 = vmatprep.subr.mxu0 0.0
      %879 = vmatpush2.msra.mxu0 0.0
      %880 = vmatprep.subr.mxu0 0.0
      %881 = vmatpush2.msra.mxu0 0.0
      %882 = vmatprep.subr.mxu0 0.0
      %883 = vmatpush2.msra.mxu0 0.0
      %884 = vmatprep.mubr.f32.mxu0 0.0
      %v885 = vand.u32 %v214, 4294901760
      %v886 = vsub.f32 %v214, %v885
      %v887 = vand.u32 %v886, 4294901760
      %v888 = vsub.f32 %v886, %v887
      %v889 = vand.u32 %v888, 4294901760
      %890 = vmatmul.mubr.f32.gmra.mxu0 %v889
      %v891 = vpop.f32.mrf.mxu0
      %v892 = vadd.f32 0.0, %v891
      %v893 = vpop.f32.mrf.mxu0
      %894 = vmatprep.mubr.f32.mxu0 0.0
      %v895 = vand.u32 %v217, 4294901760
      %v896 = vsub.f32 %v217, %v895
      %v897 = vand.u32 %v896, 4294901760
      %v898 = vsub.f32 %v896, %v897
      %v899 = vand.u32 %v898, 4294901760
      %900 = vmatmul.mubr.f32.gmra.mxu0 %v899
      %v901 = vpop.f32.mrf.mxu0
      %v902 = vadd.f32 0.0, %v901
      %v903 = vpop.f32.mrf.mxu0
      %904 = vmatprep.mubr.f32.mxu0 0.0
      %v905 = vand.u32 %v220, 4294901760
      %v906 = vsub.f32 %v220, %v905
      %v907 = vand.u32 %v906, 4294901760
      %v908 = vsub.f32 %v906, %v907
      %v909 = vand.u32 %v908, 4294901760
      %910 = vmatmul.mubr.f32.gmra.mxu0 %v909
      %v911 = vpop.f32.mrf.mxu0
      %v912 = vadd.f32 0.0, %v911
      %v913 = vpop.f32.mrf.mxu0
      %914 = vmatprep.mubr.f32.mxu0 0.0
      %v915 = vand.u32 %v223, 4294901760
      %v916 = vsub.f32 %v223, %v915
      %v917 = vand.u32 %v916, 4294901760
      %v918 = vsub.f32 %v916, %v917
      %v919 = vand.u32 %v918, 4294901760
      %920 = vmatmul.mubr.f32.gmra.mxu0 %v919
      %v921 = vpop.f32.mrf.mxu0
      %v922 = vadd.f32 0.0, %v921
      %v923 = vpop.f32.mrf.mxu0
      %924 = vdwg.mxu0
      %925 = vmatprep.subr.mxu0 0.0
      %926 = vmatpush1.msra.mxu0 0.0
      %927 = vmatprep.subr.mxu0 0.0
      %928 = vmatpush1.msra.mxu0 0.0
      %929 = vmatprep.subr.mxu0 0.0
      %930 = vmatpush1.msra.mxu0 0.0
      %931 = vmatprep.subr.mxu0 0.0
      %932 = vmatpush1.msra.mxu0 0.0
      %933 = vmatprep.subr.mxu0 0.0
      %934 = vmatpush1.msra.mxu0 0.0
      %935 = vmatprep.subr.mxu0 0.0
      %936 = vmatpush1.msra.mxu0 0.0
      %937 = vmatprep.subr.mxu0 0.0
      %938 = vmatpush1.msra.mxu0 0.0
      %939 = vmatprep.subr.mxu0 0.0
      %940 = vmatpush1.msra.mxu0 0.0
      %941 = vmatprep.subr.mxu0 0.0
      %942 = vmatpush1.msra.mxu0 0.0
      %943 = vmatprep.subr.mxu0 0.0
      %944 = vmatpush1.msra.mxu0 0.0
      %945 = vmatprep.subr.mxu0 0.0
      %946 = vmatpush1.msra.mxu0 0.0
      %947 = vmatprep.subr.mxu0 0.0
      %948 = vmatpush1.msra.mxu0 0.0
      %949 = vmatprep.subr.mxu0 0.0
      %950 = vmatpush1.msra.mxu0 0.0
      %951 = vmatprep.subr.mxu0 0.0
      %952 = vmatpush1.msra.mxu0 0.0
      %953 = vmatprep.subr.mxu0 0.0
      %v954 = vand.u32 %v187, 4294901760
      %v955 = vsub.f32 %v187, %v954
      %v956 = vand.u32 %v955, 4294901760
      %v957 = vsub.f32 %v955, %v956
      %v958 = vand.u32 %v957, 4294901760
      %959 = vmatpush1.msra.mxu0 %v958
      %960 = vmatprep.subr.mxu0 0.0
      %v961 = vand.u32 %v186, 4294901760
      %v962 = vsub.f32 %v186, %v961
      %v963 = vand.u32 %v962, 4294901760
      %v964 = vsub.f32 %v962, %v963
      %v965 = vand.u32 %v964, 4294901760
      %966 = vmatpush1.msra.mxu0 %v965
      %967 = vmatprep.subr.mxu0 0.0
      %968 = vmatpush2.msra.mxu0 0.0
      %969 = vmatprep.subr.mxu0 0.0
      %970 = vmatpush2.msra.mxu0 0.0
      %971 = vmatprep.subr.mxu0 0.0
      %972 = vmatpush2.msra.mxu0 0.0
      %973 = vmatprep.subr.mxu0 0.0
      %974 = vmatpush2.msra.mxu0 0.0
      %975 = vmatprep.subr.mxu0 0.0
      %976 = vmatpush2.msra.mxu0 0.0
      %977 = vmatprep.subr.mxu0 0.0
      %978 = vmatpush2.msra.mxu0 0.0
      %979 = vmatprep.subr.mxu0 0.0
      %980 = vmatpush2.msra.mxu0 0.0
      %981 = vmatprep.subr.mxu0 0.0
      %982 = vmatpush2.msra.mxu0 0.0
      %983 = vmatprep.subr.mxu0 0.0
      %984 = vmatpush2.msra.mxu0 0.0
      %985 = vmatprep.subr.mxu0 0.0
      %986 = vmatpush2.msra.mxu0 0.0
      %987 = vmatprep.subr.mxu0 0.0
      %988 = vmatpush2.msra.mxu0 0.0
      %989 = vmatprep.subr.mxu0 0.0
      %990 = vmatpush2.msra.mxu0 0.0
      %991 = vmatprep.subr.mxu0 0.0
      %992 = vmatpush2.msra.mxu0 0.0
      %993 = vmatprep.subr.mxu0 0.0
      %994 = vmatpush2.msra.mxu0 0.0
      %995 = vmatprep.subr.mxu0 0.0
      %996 = vmatpush2.msra.mxu0 0.0
      %997 = vmatprep.subr.mxu0 0.0
      %998 = vmatpush2.msra.mxu0 0.0
      %999 = vmatprep.mubr.f32.mxu0 0.0
      %v1000 = vand.u32 %v214, 4294901760
      %1001 = vmatmul.mubr.f32.gmra.mxu0 %v1000
      %v1002 = vpop.f32.mrf.mxu0
      %v1003 = vadd.f32 %v892, %v1002
      %v1004 = vpop.f32.mrf.mxu0
      %1005 = vmatprep.mubr.f32.mxu0 0.0
      %v1006 = vand.u32 %v217, 4294901760
      %1007 = vmatmul.mubr.f32.gmra.mxu0 %v1006
      %v1008 = vpop.f32.mrf.mxu0
      %v1009 = vadd.f32 %v902, %v1008
      %v1010 = vpop.f32.mrf.mxu0
      %1011 = vmatprep.mubr.f32.mxu0 0.0
      %v1012 = vand.u32 %v220, 4294901760
      %1013 = vmatmul.mubr.f32.gmra.mxu0 %v1012
      %v1014 = vpop.f32.mrf.mxu0
      %v1015 = vadd.f32 %v912, %v1014
      %v1016 = vpop.f32.mrf.mxu0
      %1017 = vmatprep.mubr.f32.mxu0 0.0
      %v1018 = vand.u32 %v223, 4294901760
      %1019 = vmatmul.mubr.f32.gmra.mxu0 %v1018
      %v1020 = vpop.f32.mrf.mxu0
      %v1021 = vadd.f32 %v922, %v1020
      %v1022 = vpop.f32.mrf.mxu0
      %1023 = vdwg.mxu0
      %1024 = vmatprep.subr.mxu0 0.0
      %1025 = vmatpush1.msra.mxu0 0.0
      %1026 = vmatprep.subr.mxu0 0.0
      %1027 = vmatpush1.msra.mxu0 0.0
      %1028 = vmatprep.subr.mxu0 0.0
      %1029 = vmatpush1.msra.mxu0 0.0
      %1030 = vmatprep.subr.mxu0 0.0
      %1031 = vmatpush1.msra.mxu0 0.0
      %1032 = vmatprep.subr.mxu0 0.0
      %1033 = vmatpush1.msra.mxu0 0.0
      %1034 = vmatprep.subr.mxu0 0.0
      %1035 = vmatpush1.msra.mxu0 0.0
      %1036 = vmatprep.subr.mxu0 0.0
      %1037 = vmatpush1.msra.mxu0 0.0
      %1038 = vmatprep.subr.mxu0 0.0
      %1039 = vmatpush1.msra.mxu0 0.0
      %1040 = vmatprep.subr.mxu0 0.0
      %1041 = vmatpush1.msra.mxu0 0.0
      %1042 = vmatprep.subr.mxu0 0.0
      %1043 = vmatpush1.msra.mxu0 0.0
      %1044 = vmatprep.subr.mxu0 0.0
      %1045 = vmatpush1.msra.mxu0 0.0
      %1046 = vmatprep.subr.mxu0 0.0
      %1047 = vmatpush1.msra.mxu0 0.0
      %1048 = vmatprep.subr.mxu0 0.0
      %1049 = vmatpush1.msra.mxu0 0.0
      %1050 = vmatprep.subr.mxu0 0.0
      %1051 = vmatpush1.msra.mxu0 0.0
      %1052 = vmatprep.subr.mxu0 0.0
      %v1053 = vand.u32 %v187, 4294901760
      %v1054 = vsub.f32 %v187, %v1053
      %1055 = vmatpush1.msra.mxu0 %v1054
      %1056 = vmatprep.subr.mxu0 0.0
      %v1057 = vand.u32 %v186, 4294901760
      %v1058 = vsub.f32 %v186, %v1057
      %1059 = vmatpush1.msra.mxu0 %v1058
      %1060 = vmatprep.subr.mxu0 0.0
      %1061 = vmatpush2.msra.mxu0 0.0
      %1062 = vmatprep.subr.mxu0 0.0
      %1063 = vmatpush2.msra.mxu0 0.0
      %1064 = vmatprep.subr.mxu0 0.0
      %1065 = vmatpush2.msra.mxu0 0.0
      %1066 = vmatprep.subr.mxu0 0.0
      %1067 = vmatpush2.msra.mxu0 0.0
      %1068 = vmatprep.subr.mxu0 0.0
      %1069 = vmatpush2.msra.mxu0 0.0
      %1070 = vmatprep.subr.mxu0 0.0
      %1071 = vmatpush2.msra.mxu0 0.0
      %1072 = vmatprep.subr.mxu0 0.0
      %1073 = vmatpush2.msra.mxu0 0.0
      %1074 = vmatprep.subr.mxu0 0.0
      %1075 = vmatpush2.msra.mxu0 0.0
      %1076 = vmatprep.subr.mxu0 0.0
      %1077 = vmatpush2.msra.mxu0 0.0
      %1078 = vmatprep.subr.mxu0 0.0
      %1079 = vmatpush2.msra.mxu0 0.0
      %1080 = vmatprep.subr.mxu0 0.0
      %1081 = vmatpush2.msra.mxu0 0.0
      %1082 = vmatprep.subr.mxu0 0.0
      %1083 = vmatpush2.msra.mxu0 0.0
      %1084 = vmatprep.subr.mxu0 0.0
      %1085 = vmatpush2.msra.mxu0 0.0
      %1086 = vmatprep.subr.mxu0 0.0
      %1087 = vmatpush2.msra.mxu0 0.0
      %1088 = vmatprep.subr.mxu0 0.0
      %1089 = vmatpush2.msra.mxu0 0.0
      %1090 = vmatprep.subr.mxu0 0.0
      %1091 = vmatpush2.msra.mxu0 0.0
      %1092 = vmatprep.mubr.f32.mxu0 0.0
      %v1093 = vand.u32 %v214, 4294901760
      %v1094 = vsub.f32 %v214, %v1093
      %1095 = vmatmul.mubr.f32.gmra.mxu0 %v1094
      %v1096 = vpop.f32.mrf.mxu0
      %v1097 = vadd.f32 %v1003, %v1096
      %v1098 = vpop.f32.mrf.mxu0
      %1099 = vmatprep.mubr.f32.mxu0 0.0
      %v1100 = vand.u32 %v217, 4294901760
      %v1101 = vsub.f32 %v217, %v1100
      %1102 = vmatmul.mubr.f32.gmra.mxu0 %v1101
      %v1103 = vpop.f32.mrf.mxu0
      %v1104 = vadd.f32 %v1009, %v1103
      %v1105 = vpop.f32.mrf.mxu0
      %1106 = vmatprep.mubr.f32.mxu0 0.0
      %v1107 = vand.u32 %v220, 4294901760
      %v1108 = vsub.f32 %v220, %v1107
      %1109 = vmatmul.mubr.f32.gmra.mxu0 %v1108
      %v1110 = vpop.f32.mrf.mxu0
      %v1111 = vadd.f32 %v1015, %v1110
      %v1112 = vpop.f32.mrf.mxu0
      %1113 = vmatprep.mubr.f32.mxu0 0.0
      %v1114 = vand.u32 %v223, 4294901760
      %v1115 = vsub.f32 %v223, %v1114
      %1116 = vmatmul.mubr.f32.gmra.mxu0 %v1115
      %v1117 = vpop.f32.mrf.mxu0
      %v1118 = vadd.f32 %v1021, %v1117
      %v1119 = vpop.f32.mrf.mxu0
      %1120 = vdwg.mxu0
      %1121 = vmatprep.subr.mxu0 0.0
      %1122 = vmatpush1.msra.mxu0 0.0
      %1123 = vmatprep.subr.mxu0 0.0
      %1124 = vmatpush1.msra.mxu0 0.0
      %1125 = vmatprep.subr.mxu0 0.0
      %1126 = vmatpush1.msra.mxu0 0.0
      %1127 = vmatprep.subr.mxu0 0.0
      %1128 = vmatpush1.msra.mxu0 0.0
      %1129 = vmatprep.subr.mxu0 0.0
      %1130 = vmatpush1.msra.mxu0 0.0
      %1131 = vmatprep.subr.mxu0 0.0
      %1132 = vmatpush1.msra.mxu0 0.0
      %1133 = vmatprep.subr.mxu0 0.0
      %1134 = vmatpush1.msra.mxu0 0.0
      %1135 = vmatprep.subr.mxu0 0.0
      %1136 = vmatpush1.msra.mxu0 0.0
      %1137 = vmatprep.subr.mxu0 0.0
      %1138 = vmatpush1.msra.mxu0 0.0
      %1139 = vmatprep.subr.mxu0 0.0
      %1140 = vmatpush1.msra.mxu0 0.0
      %1141 = vmatprep.subr.mxu0 0.0
      %1142 = vmatpush1.msra.mxu0 0.0
      %1143 = vmatprep.subr.mxu0 0.0
      %1144 = vmatpush1.msra.mxu0 0.0
      %1145 = vmatprep.subr.mxu0 0.0
      %1146 = vmatpush1.msra.mxu0 0.0
      %1147 = vmatprep.subr.mxu0 0.0
      %1148 = vmatpush1.msra.mxu0 0.0
      %1149 = vmatprep.subr.mxu0 0.0
      %v1150 = vand.u32 %v187, 4294901760
      %1151 = vmatpush1.msra.mxu0 %v1150
      %1152 = vmatprep.subr.mxu0 0.0
      %v1153 = vand.u32 %v186, 4294901760
      %1154 = vmatpush1.msra.mxu0 %v1153
      %1155 = vmatprep.subr.mxu0 0.0
      %1156 = vmatpush2.msra.mxu0 0.0
      %1157 = vmatprep.subr.mxu0 0.0
      %1158 = vmatpush2.msra.mxu0 0.0
      %1159 = vmatprep.subr.mxu0 0.0
      %1160 = vmatpush2.msra.mxu0 0.0
      %1161 = vmatprep.subr.mxu0 0.0
      %1162 = vmatpush2.msra.mxu0 0.0
      %1163 = vmatprep.subr.mxu0 0.0
      %1164 = vmatpush2.msra.mxu0 0.0
      %1165 = vmatprep.subr.mxu0 0.0
      %1166 = vmatpush2.msra.mxu0 0.0
      %1167 = vmatprep.subr.mxu0 0.0
      %1168 = vmatpush2.msra.mxu0 0.0
      %1169 = vmatprep.subr.mxu0 0.0
      %1170 = vmatpush2.msra.mxu0 0.0
      %1171 = vmatprep.subr.mxu0 0.0
      %1172 = vmatpush2.msra.mxu0 0.0
      %1173 = vmatprep.subr.mxu0 0.0
      %1174 = vmatpush2.msra.mxu0 0.0
      %1175 = vmatprep.subr.mxu0 0.0
      %1176 = vmatpush2.msra.mxu0 0.0
      %1177 = vmatprep.subr.mxu0 0.0
      %1178 = vmatpush2.msra.mxu0 0.0
      %1179 = vmatprep.subr.mxu0 0.0
      %1180 = vmatpush2.msra.mxu0 0.0
      %1181 = vmatprep.subr.mxu0 0.0
      %1182 = vmatpush2.msra.mxu0 0.0
      %1183 = vmatprep.subr.mxu0 0.0
      %1184 = vmatpush2.msra.mxu0 0.0
      %1185 = vmatprep.subr.mxu0 0.0
      %1186 = vmatpush2.msra.mxu0 0.0
      %1187 = vmatprep.mubr.f32.mxu0 0.0
      %v1188 = vand.u32 %v214, 4294901760
      %v1189 = vsub.f32 %v214, %v1188
      %v1190 = vand.u32 %v1189, 4294901760
      %1191 = vmatmul.mubr.f32.gmra.mxu0 %v1190
      %v1192 = vpop.f32.mrf.mxu0
      %v1193 = vadd.f32 %v1097, %v1192
      %v1194 = vpop.f32.mrf.mxu0
      %1195 = vmatprep.mubr.f32.mxu0 0.0
      %v1196 = vand.u32 %v217, 4294901760
      %v1197 = vsub.f32 %v217, %v1196
      %v1198 = vand.u32 %v1197, 4294901760
      %1199 = vmatmul.mubr.f32.gmra.mxu0 %v1198
      %v1200 = vpop.f32.mrf.mxu0
      %v1201 = vadd.f32 %v1104, %v1200
      %v1202 = vpop.f32.mrf.mxu0
      %1203 = vmatprep.mubr.f32.mxu0 0.0
      %v1204 = vand.u32 %v220, 4294901760
      %v1205 = vsub.f32 %v220, %v1204
      %v1206 = vand.u32 %v1205, 4294901760
      %1207 = vmatmul.mubr.f32.gmra.mxu0 %v1206
      %v1208 = vpop.f32.mrf.mxu0
      %v1209 = vadd.f32 %v1111, %v1208
      %v1210 = vpop.f32.mrf.mxu0
      %1211 = vmatprep.mubr.f32.mxu0 0.0
      %v1212 = vand.u32 %v223, 4294901760
      %v1213 = vsub.f32 %v223, %v1212
      %v1214 = vand.u32 %v1213, 4294901760
      %1215 = vmatmul.mubr.f32.gmra.mxu0 %v1214
      %v1216 = vpop.f32.mrf.mxu0
      %v1217 = vadd.f32 %v1118, %v1216
      %v1218 = vpop.f32.mrf.mxu0
      %1219 = vdwg.mxu0
      %1220 = vmatprep.subr.mxu0 0.0
      %1221 = vmatpush1.msra.mxu0 0.0
      %1222 = vmatprep.subr.mxu0 0.0
      %1223 = vmatpush1.msra.mxu0 0.0
      %1224 = vmatprep.subr.mxu0 0.0
      %1225 = vmatpush1.msra.mxu0 0.0
      %1226 = vmatprep.subr.mxu0 0.0
      %1227 = vmatpush1.msra.mxu0 0.0
      %1228 = vmatprep.subr.mxu0 0.0
      %1229 = vmatpush1.msra.mxu0 0.0
      %1230 = vmatprep.subr.mxu0 0.0
      %1231 = vmatpush1.msra.mxu0 0.0
      %1232 = vmatprep.subr.mxu0 0.0
      %1233 = vmatpush1.msra.mxu0 0.0
      %1234 = vmatprep.subr.mxu0 0.0
      %1235 = vmatpush1.msra.mxu0 0.0
      %1236 = vmatprep.subr.mxu0 0.0
      %1237 = vmatpush1.msra.mxu0 0.0
      %1238 = vmatprep.subr.mxu0 0.0
      %1239 = vmatpush1.msra.mxu0 0.0
      %1240 = vmatprep.subr.mxu0 0.0
      %1241 = vmatpush1.msra.mxu0 0.0
      %1242 = vmatprep.subr.mxu0 0.0
      %1243 = vmatpush1.msra.mxu0 0.0
      %1244 = vmatprep.subr.mxu0 0.0
      %1245 = vmatpush1.msra.mxu0 0.0
      %1246 = vmatprep.subr.mxu0 0.0
      %1247 = vmatpush1.msra.mxu0 0.0
      %1248 = vmatprep.subr.mxu0 0.0
      %v1249 = vand.u32 %v187, 4294901760
      %v1250 = vsub.f32 %v187, %v1249
      %v1251 = vand.u32 %v1250, 4294901760
      %1252 = vmatpush1.msra.mxu0 %v1251
      %1253 = vmatprep.subr.mxu0 0.0
      %v1254 = vand.u32 %v186, 4294901760
      %v1255 = vsub.f32 %v186, %v1254
      %v1256 = vand.u32 %v1255, 4294901760
      %1257 = vmatpush1.msra.mxu0 %v1256
      %1258 = vmatprep.subr.mxu0 0.0
      %1259 = vmatpush2.msra.mxu0 0.0
      %1260 = vmatprep.subr.mxu0 0.0
      %1261 = vmatpush2.msra.mxu0 0.0
      %1262 = vmatprep.subr.mxu0 0.0
      %1263 = vmatpush2.msra.mxu0 0.0
      %1264 = vmatprep.subr.mxu0 0.0
      %1265 = vmatpush2.msra.mxu0 0.0
      %1266 = vmatprep.subr.mxu0 0.0
      %1267 = vmatpush2.msra.mxu0 0.0
      %1268 = vmatprep.subr.mxu0 0.0
      %1269 = vmatpush2.msra.mxu0 0.0
      %1270 = vmatprep.subr.mxu0 0.0
      %1271 = vmatpush2.msra.mxu0 0.0
      %1272 = vmatprep.subr.mxu0 0.0
      %1273 = vmatpush2.msra.mxu0 0.0
      %1274 = vmatprep.subr.mxu0 0.0
      %1275 = vmatpush2.msra.mxu0 0.0
      %1276 = vmatprep.subr.mxu0 0.0
      %1277 = vmatpush2.msra.mxu0 0.0
      %1278 = vmatprep.subr.mxu0 0.0
      %1279 = vmatpush2.msra.mxu0 0.0
      %1280 = vmatprep.subr.mxu0 0.0
      %1281 = vmatpush2.msra.mxu0 0.0
      %1282 = vmatprep.subr.mxu0 0.0
      %1283 = vmatpush2.msra.mxu0 0.0
      %1284 = vmatprep.subr.mxu0 0.0
      %1285 = vmatpush2.msra.mxu0 0.0
      %1286 = vmatprep.subr.mxu0 0.0
      %1287 = vmatpush2.msra.mxu0 0.0
      %1288 = vmatprep.subr.mxu0 0.0
      %1289 = vmatpush2.msra.mxu0 0.0
      %1290 = vmatprep.mubr.f32.mxu0 0.0
      %v1291 = vand.u32 %v214, 4294901760
      %1292 = vmatmul.mubr.f32.gmra.mxu0 %v1291
      %v1293 = vpop.f32.mrf.mxu0
      %v1294 = vadd.f32 %v1193, %v1293
      %v1295 = vpop.f32.mrf.mxu0
      %1296 = vmatprep.mubr.f32.mxu0 0.0
      %v1297 = vand.u32 %v217, 4294901760
      %1298 = vmatmul.mubr.f32.gmra.mxu0 %v1297
      %v1299 = vpop.f32.mrf.mxu0
      %v1300 = vadd.f32 %v1201, %v1299
      %v1301 = vpop.f32.mrf.mxu0
      %1302 = vmatprep.mubr.f32.mxu0 0.0
      %v1303 = vand.u32 %v220, 4294901760
      %1304 = vmatmul.mubr.f32.gmra.mxu0 %v1303
      %v1305 = vpop.f32.mrf.mxu0
      %v1306 = vadd.f32 %v1209, %v1305
      %v1307 = vpop.f32.mrf.mxu0
      %1308 = vmatprep.mubr.f32.mxu0 0.0
      %v1309 = vand.u32 %v223, 4294901760
      %1310 = vmatmul.mubr.f32.gmra.mxu0 %v1309
      %v1311 = vpop.f32.mrf.mxu0
      %v1312 = vadd.f32 %v1217, %v1311
      %v1313 = vpop.f32.mrf.mxu0
      %1314 = vdwg.mxu0
      %1315 = vmatprep.subr.mxu0 0.0
      %1316 = vmatpush1.msra.mxu0 0.0
      %1317 = vmatprep.subr.mxu0 0.0
      %1318 = vmatpush1.msra.mxu0 0.0
      %1319 = vmatprep.subr.mxu0 0.0
      %1320 = vmatpush1.msra.mxu0 0.0
      %1321 = vmatprep.subr.mxu0 0.0
      %1322 = vmatpush1.msra.mxu0 0.0
      %1323 = vmatprep.subr.mxu0 0.0
      %1324 = vmatpush1.msra.mxu0 0.0
      %1325 = vmatprep.subr.mxu0 0.0
      %1326 = vmatpush1.msra.mxu0 0.0
      %1327 = vmatprep.subr.mxu0 0.0
      %1328 = vmatpush1.msra.mxu0 0.0
      %1329 = vmatprep.subr.mxu0 0.0
      %1330 = vmatpush1.msra.mxu0 0.0
      %1331 = vmatprep.subr.mxu0 0.0
      %1332 = vmatpush1.msra.mxu0 0.0
      %1333 = vmatprep.subr.mxu0 0.0
      %1334 = vmatpush1.msra.mxu0 0.0
      %1335 = vmatprep.subr.mxu0 0.0
      %1336 = vmatpush1.msra.mxu0 0.0
      %1337 = vmatprep.subr.mxu0 0.0
      %1338 = vmatpush1.msra.mxu0 0.0
      %1339 = vmatprep.subr.mxu0 0.0
      %1340 = vmatpush1.msra.mxu0 0.0
      %1341 = vmatprep.subr.mxu0 0.0
      %1342 = vmatpush1.msra.mxu0 0.0
      %1343 = vmatprep.subr.mxu0 0.0
      %v1344 = vand.u32 %v187, 4294901760
      %1345 = vmatpush1.msra.mxu0 %v1344
      %1346 = vmatprep.subr.mxu0 0.0
      %v1347 = vand.u32 %v186, 4294901760
      %1348 = vmatpush1.msra.mxu0 %v1347
      %1349 = vmatprep.subr.mxu0 0.0
      %1350 = vmatpush2.msra.mxu0 0.0
      %1351 = vmatprep.subr.mxu0 0.0
      %1352 = vmatpush2.msra.mxu0 0.0
      %1353 = vmatprep.subr.mxu0 0.0
      %1354 = vmatpush2.msra.mxu0 0.0
      %1355 = vmatprep.subr.mxu0 0.0
      %1356 = vmatpush2.msra.mxu0 0.0
      %1357 = vmatprep.subr.mxu0 0.0
      %1358 = vmatpush2.msra.mxu0 0.0
      %1359 = vmatprep.subr.mxu0 0.0
      %1360 = vmatpush2.msra.mxu0 0.0
      %1361 = vmatprep.subr.mxu0 0.0
      %1362 = vmatpush2.msra.mxu0 0.0
      %1363 = vmatprep.subr.mxu0 0.0
      %1364 = vmatpush2.msra.mxu0 0.0
      %1365 = vmatprep.subr.mxu0 0.0
      %1366 = vmatpush2.msra.mxu0 0.0
      %1367 = vmatprep.subr.mxu0 0.0
      %1368 = vmatpush2.msra.mxu0 0.0
      %1369 = vmatprep.subr.mxu0 0.0
      %1370 = vmatpush2.msra.mxu0 0.0
      %1371 = vmatprep.subr.mxu0 0.0
      %1372 = vmatpush2.msra.mxu0 0.0
      %1373 = vmatprep.subr.mxu0 0.0
      %1374 = vmatpush2.msra.mxu0 0.0
      %1375 = vmatprep.subr.mxu0 0.0
      %1376 = vmatpush2.msra.mxu0 0.0
      %1377 = vmatprep.subr.mxu0 0.0
      %1378 = vmatpush2.msra.mxu0 0.0
      %1379 = vmatprep.subr.mxu0 0.0
      %1380 = vmatpush2.msra.mxu0 0.0
      %1381 = vmatprep.mubr.f32.mxu0 0.0
      %v1382 = vand.u32 %v214, 4294901760
      %1383 = vmatmul.mubr.f32.gmra.mxu0 %v1382
      %v1384 = vpop.f32.mrf.mxu0
      %v1385 = vadd.f32 %v1294, %v1384
      %v1386 = vpop.f32.mrf.mxu0
      %1387 = vmatprep.mubr.f32.mxu0 0.0
      %v1388 = vand.u32 %v217, 4294901760
      %1389 = vmatmul.mubr.f32.gmra.mxu0 %v1388
      %v1390 = vpop.f32.mrf.mxu0
      %v1391 = vadd.f32 %v1300, %v1390
      %v1392 = vpop.f32.mrf.mxu0
      %1393 = vmatprep.mubr.f32.mxu0 0.0
      %v1394 = vand.u32 %v220, 4294901760
      %1395 = vmatmul.mubr.f32.gmra.mxu0 %v1394
      %v1396 = vpop.f32.mrf.mxu0
      %v1397 = vadd.f32 %v1306, %v1396
      %v1398 = vpop.f32.mrf.mxu0
      %1399 = vmatprep.mubr.f32.mxu0 0.0
      %v1400 = vand.u32 %v223, 4294901760
      %1401 = vmatmul.mubr.f32.gmra.mxu0 %v1400
      %v1402 = vpop.f32.mrf.mxu0
      %v1403 = vadd.f32 %v1312, %v1402
      %v1404 = vpop.f32.mrf.mxu0
      %1405 = vdwg.mxu0
      %s1406 = scalar_lea.vmem %s181, 32
      %1407 = vst.msk [vmem:[%s1406] sm:$0xff] %vm813, %v1385
      %1408 = vst.msk [vmem:[%s1406 + $0x8] sm:$0xff] %vm813, %v1391
      %1409 = vst.msk [vmem:[%s1406 + $0x10] sm:$0xff] %vm813, %v1397
      %1410 = vst.msk [vmem:[%s1406 + $0x18] sm:$0xff] %vm813, %v1403
      %1411 = vrot.lane.b32.xlu0 %v188, 16
      %v1412 = vpop.permute.xlu0 %1411
      %1413 = vrot.lane.b32.xlu0 %v189, 16
      %v1414 = vpop.permute.xlu0 %1413
      %1415 = vrot.lane.b32.xlu0 %v190, 16
      %v1416 = vpop.permute.xlu0 %1415
      %1417 = vrot.lane.b32.xlu0 %v191, 16
      %v1418 = vpop.permute.xlu0 %1417
      %v1423 = vsub.f32 %v188, %v1412
      %v1424 = vsub.f32 %v189, %v1414
      %v1425 = vsub.f32 %v190, %v1416
      %v1426 = vsub.f32 %v191, %v1418
      %1431 = vrot.lane.b32.xlu0 %v1423, 112
      %v1432 = vpop.permute.xlu0 %1431
      %1433 = vrot.lane.b32.xlu0 %v1424, 112
      %v1434 = vpop.permute.xlu0 %1433
      %1435 = vrot.lane.b32.xlu0 %v1425, 112
      %v1436 = vpop.permute.xlu0 %1435
      %1437 = vrot.lane.b32.xlu0 %v1426, 112
      %v1438 = vpop.permute.xlu0 %1437
      %v1439 = vsel %vm212, %v1432, 0
      %v1441 = vsel %vm212, %v1434, 0
      %v1443 = vsel %vm212, %v1436, 0
      %v1445 = vsel %vm212, %v1438, 0
      %1447 = vmatprep.subr.mxu0 0.0
      %1448 = vmatpush1.msra.mxu0 0.0
      %1449 = vmatprep.subr.mxu0 0.0
      %1450 = vmatpush1.msra.mxu0 0.0
      %1451 = vmatprep.subr.mxu0 0.0
      %1452 = vmatpush1.msra.mxu0 0.0
      %1453 = vmatprep.subr.mxu0 0.0
      %1454 = vmatpush1.msra.mxu0 0.0
      %1455 = vmatprep.subr.mxu0 0.0
      %1456 = vmatpush1.msra.mxu0 0.0
      %1457 = vmatprep.subr.mxu0 0.0
      %1458 = vmatpush1.msra.mxu0 0.0
      %1459 = vmatprep.subr.mxu0 0.0
      %1460 = vmatpush1.msra.mxu0 0.0
      %1461 = vmatprep.subr.mxu0 0.0
      %1462 = vmatpush1.msra.mxu0 0.0
      %1463 = vmatprep.subr.mxu0 0.0
      %1464 = vmatpush1.msra.mxu0 0.0
      %1465 = vmatprep.subr.mxu0 0.0
      %1466 = vmatpush1.msra.mxu0 0.0
      %1467 = vmatprep.subr.mxu0 0.0
      %1468 = vmatpush1.msra.mxu0 0.0
      %1469 = vmatprep.subr.mxu0 0.0
      %1470 = vmatpush1.msra.mxu0 0.0
      %1471 = vmatprep.subr.mxu0 0.0
      %1472 = vmatpush1.msra.mxu0 0.0
      %1473 = vmatprep.subr.mxu0 0.0
      %1474 = vmatpush1.msra.mxu0 0.0
      %1475 = vmatprep.subr.mxu0 0.0
      %v1476 = vand.u32 %v184, 4294901760
      %1477 = vmatpush1.msra.mxu0 %v1476
      %1478 = vmatprep.subr.mxu0 0.0
      %v1479 = vand.u32 %v183, 4294901760
      %1480 = vmatpush1.msra.mxu0 %v1479
      %1481 = vmatprep.subr.mxu0 0.0
      %1482 = vmatpush2.msra.mxu0 0.0
      %1483 = vmatprep.subr.mxu0 0.0
      %1484 = vmatpush2.msra.mxu0 0.0
      %1485 = vmatprep.subr.mxu0 0.0
      %1486 = vmatpush2.msra.mxu0 0.0
      %1487 = vmatprep.subr.mxu0 0.0
      %1488 = vmatpush2.msra.mxu0 0.0
      %1489 = vmatprep.subr.mxu0 0.0
      %1490 = vmatpush2.msra.mxu0 0.0
      %1491 = vmatprep.subr.mxu0 0.0
      %1492 = vmatpush2.msra.mxu0 0.0
      %1493 = vmatprep.subr.mxu0 0.0
      %1494 = vmatpush2.msra.mxu0 0.0
      %1495 = vmatprep.subr.mxu0 0.0
      %1496 = vmatpush2.msra.mxu0 0.0
      %1497 = vmatprep.subr.mxu0 0.0
      %1498 = vmatpush2.msra.mxu0 0.0
      %1499 = vmatprep.subr.mxu0 0.0
      %1500 = vmatpush2.msra.mxu0 0.0
      %1501 = vmatprep.subr.mxu0 0.0
      %1502 = vmatpush2.msra.mxu0 0.0
      %1503 = vmatprep.subr.mxu0 0.0
      %1504 = vmatpush2.msra.mxu0 0.0
      %1505 = vmatprep.subr.mxu0 0.0
      %1506 = vmatpush2.msra.mxu0 0.0
      %1507 = vmatprep.subr.mxu0 0.0
      %1508 = vmatpush2.msra.mxu0 0.0
      %1509 = vmatprep.subr.mxu0 0.0
      %1510 = vmatpush2.msra.mxu0 0.0
      %1511 = vmatprep.subr.mxu0 0.0
      %1512 = vmatpush2.msra.mxu0 0.0
      %1513 = vmatprep.mubr.f32.mxu0 0.0
      %v1514 = vand.u32 %v1439, 4294901760
      %v1515 = vsub.f32 %v1439, %v1514
      %v1516 = vand.u32 %v1515, 4294901760
      %v1517 = vsub.f32 %v1515, %v1516
      %v1518 = vand.u32 %v1517, 4294901760
      %1519 = vmatmul.mubr.f32.gmra.mxu0 %v1518
      %v1520 = vpop.f32.mrf.mxu0
      %v1521 = vadd.f32 0.0, %v1520
      %v1522 = vpop.f32.mrf.mxu0
      %1523 = vmatprep.mubr.f32.mxu0 0.0
      %v1524 = vand.u32 %v1441, 4294901760
      %v1525 = vsub.f32 %v1441, %v1524
      %v1526 = vand.u32 %v1525, 4294901760
      %v1527 = vsub.f32 %v1525, %v1526
      %v1528 = vand.u32 %v1527, 4294901760
      %1529 = vmatmul.mubr.f32.gmra.mxu0 %v1528
      %v1530 = vpop.f32.mrf.mxu0
      %v1531 = vadd.f32 0.0, %v1530
      %v1532 = vpop.f32.mrf.mxu0
      %1533 = vmatprep.mubr.f32.mxu0 0.0
      %v1534 = vand.u32 %v1443, 4294901760
      %v1535 = vsub.f32 %v1443, %v1534
      %v1536 = vand.u32 %v1535, 4294901760
      %v1537 = vsub.f32 %v1535, %v1536
      %v1538 = vand.u32 %v1537, 4294901760
      %1539 = vmatmul.mubr.f32.gmra.mxu0 %v1538
      %v1540 = vpop.f32.mrf.mxu0
      %v1541 = vadd.f32 0.0, %v1540
      %v1542 = vpop.f32.mrf.mxu0
      %1543 = vmatprep.mubr.f32.mxu0 0.0
      %v1544 = vand.u32 %v1445, 4294901760
      %v1545 = vsub.f32 %v1445, %v1544
      %v1546 = vand.u32 %v1545, 4294901760
      %v1547 = vsub.f32 %v1545, %v1546
      %v1548 = vand.u32 %v1547, 4294901760
      %1549 = vmatmul.mubr.f32.gmra.mxu0 %v1548
      %v1550 = vpop.f32.mrf.mxu0
      %v1551 = vadd.f32 0.0, %v1550
      %v1552 = vpop.f32.mrf.mxu0
      %1553 = vdwg.mxu0
      %1554 = vmatprep.subr.mxu0 0.0
      %1555 = vmatpush1.msra.mxu0 0.0
      %1556 = vmatprep.subr.mxu0 0.0
      %1557 = vmatpush1.msra.mxu0 0.0
      %1558 = vmatprep.subr.mxu0 0.0
      %1559 = vmatpush1.msra.mxu0 0.0
      %1560 = vmatprep.subr.mxu0 0.0
      %1561 = vmatpush1.msra.mxu0 0.0
      %1562 = vmatprep.subr.mxu0 0.0
      %1563 = vmatpush1.msra.mxu0 0.0
      %1564 = vmatprep.subr.mxu0 0.0
      %1565 = vmatpush1.msra.mxu0 0.0
      %1566 = vmatprep.subr.mxu0 0.0
      %1567 = vmatpush1.msra.mxu0 0.0
      %1568 = vmatprep.subr.mxu0 0.0
      %1569 = vmatpush1.msra.mxu0 0.0
      %1570 = vmatprep.subr.mxu0 0.0
      %1571 = vmatpush1.msra.mxu0 0.0
      %1572 = vmatprep.subr.mxu0 0.0
      %1573 = vmatpush1.msra.mxu0 0.0
      %1574 = vmatprep.subr.mxu0 0.0
      %1575 = vmatpush1.msra.mxu0 0.0
      %1576 = vmatprep.subr.mxu0 0.0
      %1577 = vmatpush1.msra.mxu0 0.0
      %1578 = vmatprep.subr.mxu0 0.0
      %1579 = vmatpush1.msra.mxu0 0.0
      %1580 = vmatprep.subr.mxu0 0.0
      %1581 = vmatpush1.msra.mxu0 0.0
      %1582 = vmatprep.subr.mxu0 0.0
      %v1583 = vand.u32 %v184, 4294901760
      %v1584 = vsub.f32 %v184, %v1583
      %v1585 = vand.u32 %v1584, 4294901760
      %v1586 = vsub.f32 %v1584, %v1585
      %v1587 = vand.u32 %v1586, 4294901760
      %1588 = vmatpush1.msra.mxu0 %v1587
      %1589 = vmatprep.subr.mxu0 0.0
      %v1590 = vand.u32 %v183, 4294901760
      %v1591 = vsub.f32 %v183, %v1590
      %v1592 = vand.u32 %v1591, 4294901760
      %v1593 = vsub.f32 %v1591, %v1592
      %v1594 = vand.u32 %v1593, 4294901760
      %1595 = vmatpush1.msra.mxu0 %v1594
      %1596 = vmatprep.subr.mxu0 0.0
      %1597 = vmatpush2.msra.mxu0 0.0
      %1598 = vmatprep.subr.mxu0 0.0
      %1599 = vmatpush2.msra.mxu0 0.0
      %1600 = vmatprep.subr.mxu0 0.0
      %1601 = vmatpush2.msra.mxu0 0.0
      %1602 = vmatprep.subr.mxu0 0.0
      %1603 = vmatpush2.msra.mxu0 0.0
      %1604 = vmatprep.subr.mxu0 0.0
      %1605 = vmatpush2.msra.mxu0 0.0
      %1606 = vmatprep.subr.mxu0 0.0
      %1607 = vmatpush2.msra.mxu0 0.0
      %1608 = vmatprep.subr.mxu0 0.0
      %1609 = vmatpush2.msra.mxu0 0.0
      %1610 = vmatprep.subr.mxu0 0.0
      %1611 = vmatpush2.msra.mxu0 0.0
      %1612 = vmatprep.subr.mxu0 0.0
      %1613 = vmatpush2.msra.mxu0 0.0
      %1614 = vmatprep.subr.mxu0 0.0
      %1615 = vmatpush2.msra.mxu0 0.0
      %1616 = vmatprep.subr.mxu0 0.0
      %1617 = vmatpush2.msra.mxu0 0.0
      %1618 = vmatprep.subr.mxu0 0.0
      %1619 = vmatpush2.msra.mxu0 0.0
      %1620 = vmatprep.subr.mxu0 0.0
      %1621 = vmatpush2.msra.mxu0 0.0
      %1622 = vmatprep.subr.mxu0 0.0
      %1623 = vmatpush2.msra.mxu0 0.0
      %1624 = vmatprep.subr.mxu0 0.0
      %1625 = vmatpush2.msra.mxu0 0.0
      %1626 = vmatprep.subr.mxu0 0.0
      %1627 = vmatpush2.msra.mxu0 0.0
      %1628 = vmatprep.mubr.f32.mxu0 0.0
      %v1629 = vand.u32 %v1439, 4294901760
      %1630 = vmatmul.mubr.f32.gmra.mxu0 %v1629
      %v1631 = vpop.f32.mrf.mxu0
      %v1632 = vadd.f32 %v1521, %v1631
      %v1633 = vpop.f32.mrf.mxu0
      %1634 = vmatprep.mubr.f32.mxu0 0.0
      %v1635 = vand.u32 %v1441, 4294901760
      %1636 = vmatmul.mubr.f32.gmra.mxu0 %v1635
      %v1637 = vpop.f32.mrf.mxu0
      %v1638 = vadd.f32 %v1531, %v1637
      %v1639 = vpop.f32.mrf.mxu0
      %1640 = vmatprep.mubr.f32.mxu0 0.0
      %v1641 = vand.u32 %v1443, 4294901760
      %1642 = vmatmul.mubr.f32.gmra.mxu0 %v1641
      %v1643 = vpop.f32.mrf.mxu0
      %v1644 = vadd.f32 %v1541, %v1643
      %v1645 = vpop.f32.mrf.mxu0
      %1646 = vmatprep.mubr.f32.mxu0 0.0
      %v1647 = vand.u32 %v1445, 4294901760
      %1648 = vmatmul.mubr.f32.gmra.mxu0 %v1647
      %v1649 = vpop.f32.mrf.mxu0
      %v1650 = vadd.f32 %v1551, %v1649
      %v1651 = vpop.f32.mrf.mxu0
      %1652 = vdwg.mxu0
      %1653 = vmatprep.subr.mxu0 0.0
      %1654 = vmatpush1.msra.mxu0 0.0
      %1655 = vmatprep.subr.mxu0 0.0
      %1656 = vmatpush1.msra.mxu0 0.0
      %1657 = vmatprep.subr.mxu0 0.0
      %1658 = vmatpush1.msra.mxu0 0.0
      %1659 = vmatprep.subr.mxu0 0.0
      %1660 = vmatpush1.msra.mxu0 0.0
      %1661 = vmatprep.subr.mxu0 0.0
      %1662 = vmatpush1.msra.mxu0 0.0
      %1663 = vmatprep.subr.mxu0 0.0
      %1664 = vmatpush1.msra.mxu0 0.0
      %1665 = vmatprep.subr.mxu0 0.0
      %1666 = vmatpush1.msra.mxu0 0.0
      %1667 = vmatprep.subr.mxu0 0.0
      %1668 = vmatpush1.msra.mxu0 0.0
      %1669 = vmatprep.subr.mxu0 0.0
      %1670 = vmatpush1.msra.mxu0 0.0
      %1671 = vmatprep.subr.mxu0 0.0
      %1672 = vmatpush1.msra.mxu0 0.0
      %1673 = vmatprep.subr.mxu0 0.0
      %1674 = vmatpush1.msra.mxu0 0.0
      %1675 = vmatprep.subr.mxu0 0.0
      %1676 = vmatpush1.msra.mxu0 0.0
      %1677 = vmatprep.subr.mxu0 0.0
      %1678 = vmatpush1.msra.mxu0 0.0
      %1679 = vmatprep.subr.mxu0 0.0
      %1680 = vmatpush1.msra.mxu0 0.0
      %1681 = vmatprep.subr.mxu0 0.0
      %v1682 = vand.u32 %v184, 4294901760
      %v1683 = vsub.f32 %v184, %v1682
      %1684 = vmatpush1.msra.mxu0 %v1683
      %1685 = vmatprep.subr.mxu0 0.0
      %v1686 = vand.u32 %v183, 4294901760
      %v1687 = vsub.f32 %v183, %v1686
      %1688 = vmatpush1.msra.mxu0 %v1687
      %1689 = vmatprep.subr.mxu0 0.0
      %1690 = vmatpush2.msra.mxu0 0.0
      %1691 = vmatprep.subr.mxu0 0.0
      %1692 = vmatpush2.msra.mxu0 0.0
      %1693 = vmatprep.subr.mxu0 0.0
      %1694 = vmatpush2.msra.mxu0 0.0
      %1695 = vmatprep.subr.mxu0 0.0
      %1696 = vmatpush2.msra.mxu0 0.0
      %1697 = vmatprep.subr.mxu0 0.0
      %1698 = vmatpush2.msra.mxu0 0.0
      %1699 = vmatprep.subr.mxu0 0.0
      %1700 = vmatpush2.msra.mxu0 0.0
      %1701 = vmatprep.subr.mxu0 0.0
      %1702 = vmatpush2.msra.mxu0 0.0
      %1703 = vmatprep.subr.mxu0 0.0
      %1704 = vmatpush2.msra.mxu0 0.0
      %1705 = vmatprep.subr.mxu0 0.0
      %1706 = vmatpush2.msra.mxu0 0.0
      %1707 = vmatprep.subr.mxu0 0.0
      %1708 = vmatpush2.msra.mxu0 0.0
      %1709 = vmatprep.subr.mxu0 0.0
      %1710 = vmatpush2.msra.mxu0 0.0
      %1711 = vmatprep.subr.mxu0 0.0
      %1712 = vmatpush2.msra.mxu0 0.0
      %1713 = vmatprep.subr.mxu0 0.0
      %1714 = vmatpush2.msra.mxu0 0.0
      %1715 = vmatprep.subr.mxu0 0.0
      %1716 = vmatpush2.msra.mxu0 0.0
      %1717 = vmatprep.subr.mxu0 0.0
      %1718 = vmatpush2.msra.mxu0 0.0
      %1719 = vmatprep.subr.mxu0 0.0
      %1720 = vmatpush2.msra.mxu0 0.0
      %1721 = vmatprep.mubr.f32.mxu0 0.0
      %v1722 = vand.u32 %v1439, 4294901760
      %v1723 = vsub.f32 %v1439, %v1722
      %1724 = vmatmul.mubr.f32.gmra.mxu0 %v1723
      %v1725 = vpop.f32.mrf.mxu0
      %v1726 = vadd.f32 %v1632, %v1725
      %v1727 = vpop.f32.mrf.mxu0
      %1728 = vmatprep.mubr.f32.mxu0 0.0
      %v1729 = vand.u32 %v1441, 4294901760
      %v1730 = vsub.f32 %v1441, %v1729
      %1731 = vmatmul.mubr.f32.gmra.mxu0 %v1730
      %v1732 = vpop.f32.mrf.mxu0
      %v1733 = vadd.f32 %v1638, %v1732
      %v1734 = vpop.f32.mrf.mxu0
      %1735 = vmatprep.mubr.f32.mxu0 0.0
      %v1736 = vand.u32 %v1443, 4294901760
      %v1737 = vsub.f32 %v1443, %v1736
      %1738 = vmatmul.mubr.f32.gmra.mxu0 %v1737
      %v1739 = vpop.f32.mrf.mxu0
      %v1740 = vadd.f32 %v1644, %v1739
      %v1741 = vpop.f32.mrf.mxu0
      %1742 = vmatprep.mubr.f32.mxu0 0.0
      %v1743 = vand.u32 %v1445, 4294901760
      %v1744 = vsub.f32 %v1445, %v1743
      %1745 = vmatmul.mubr.f32.gmra.mxu0 %v1744
      %v1746 = vpop.f32.mrf.mxu0
      %v1747 = vadd.f32 %v1650, %v1746
      %v1748 = vpop.f32.mrf.mxu0
      %1749 = vdwg.mxu0
      %1750 = vmatprep.subr.mxu0 0.0
      %1751 = vmatpush1.msra.mxu0 0.0
      %1752 = vmatprep.subr.mxu0 0.0
      %1753 = vmatpush1.msra.mxu0 0.0
      %1754 = vmatprep.subr.mxu0 0.0
      %1755 = vmatpush1.msra.mxu0 0.0
      %1756 = vmatprep.subr.mxu0 0.0
      %1757 = vmatpush1.msra.mxu0 0.0
      %1758 = vmatprep.subr.mxu0 0.0
      %1759 = vmatpush1.msra.mxu0 0.0
      %1760 = vmatprep.subr.mxu0 0.0
      %1761 = vmatpush1.msra.mxu0 0.0
      %1762 = vmatprep.subr.mxu0 0.0
      %1763 = vmatpush1.msra.mxu0 0.0
      %1764 = vmatprep.subr.mxu0 0.0
      %1765 = vmatpush1.msra.mxu0 0.0
      %1766 = vmatprep.subr.mxu0 0.0
      %1767 = vmatpush1.msra.mxu0 0.0
      %1768 = vmatprep.subr.mxu0 0.0
      %1769 = vmatpush1.msra.mxu0 0.0
      %1770 = vmatprep.subr.mxu0 0.0
      %1771 = vmatpush1.msra.mxu0 0.0
      %1772 = vmatprep.subr.mxu0 0.0
      %1773 = vmatpush1.msra.mxu0 0.0
      %1774 = vmatprep.subr.mxu0 0.0
      %1775 = vmatpush1.msra.mxu0 0.0
      %1776 = vmatprep.subr.mxu0 0.0
      %1777 = vmatpush1.msra.mxu0 0.0
      %1778 = vmatprep.subr.mxu0 0.0
      %v1779 = vand.u32 %v184, 4294901760
      %1780 = vmatpush1.msra.mxu0 %v1779
      %1781 = vmatprep.subr.mxu0 0.0
      %v1782 = vand.u32 %v183, 4294901760
      %1783 = vmatpush1.msra.mxu0 %v1782
      %1784 = vmatprep.subr.mxu0 0.0
      %1785 = vmatpush2.msra.mxu0 0.0
      %1786 = vmatprep.subr.mxu0 0.0
      %1787 = vmatpush2.msra.mxu0 0.0
      %1788 = vmatprep.subr.mxu0 0.0
      %1789 = vmatpush2.msra.mxu0 0.0
      %1790 = vmatprep.subr.mxu0 0.0
      %1791 = vmatpush2.msra.mxu0 0.0
      %1792 = vmatprep.subr.mxu0 0.0
      %1793 = vmatpush2.msra.mxu0 0.0
      %1794 = vmatprep.subr.mxu0 0.0
      %1795 = vmatpush2.msra.mxu0 0.0
      %1796 = vmatprep.subr.mxu0 0.0
      %1797 = vmatpush2.msra.mxu0 0.0
      %1798 = vmatprep.subr.mxu0 0.0
      %1799 = vmatpush2.msra.mxu0 0.0
      %1800 = vmatprep.subr.mxu0 0.0
      %1801 = vmatpush2.msra.mxu0 0.0
      %1802 = vmatprep.subr.mxu0 0.0
      %1803 = vmatpush2.msra.mxu0 0.0
      %1804 = vmatprep.subr.mxu0 0.0
      %1805 = vmatpush2.msra.mxu0 0.0
      %1806 = vmatprep.subr.mxu0 0.0
      %1807 = vmatpush2.msra.mxu0 0.0
      %1808 = vmatprep.subr.mxu0 0.0
      %1809 = vmatpush2.msra.mxu0 0.0
      %1810 = vmatprep.subr.mxu0 0.0
      %1811 = vmatpush2.msra.mxu0 0.0
      %1812 = vmatprep.subr.mxu0 0.0
      %1813 = vmatpush2.msra.mxu0 0.0
      %1814 = vmatprep.subr.mxu0 0.0
      %1815 = vmatpush2.msra.mxu0 0.0
      %1816 = vmatprep.mubr.f32.mxu0 0.0
      %v1817 = vand.u32 %v1439, 4294901760
      %v1818 = vsub.f32 %v1439, %v1817
      %v1819 = vand.u32 %v1818, 4294901760
      %1820 = vmatmul.mubr.f32.gmra.mxu0 %v1819
      %v1821 = vpop.f32.mrf.mxu0
      %v1822 = vadd.f32 %v1726, %v1821
      %v1823 = vpop.f32.mrf.mxu0
      %1824 = vmatprep.mubr.f32.mxu0 0.0
      %v1825 = vand.u32 %v1441, 4294901760
      %v1826 = vsub.f32 %v1441, %v1825
      %v1827 = vand.u32 %v1826, 4294901760
      %1828 = vmatmul.mubr.f32.gmra.mxu0 %v1827
      %v1829 = vpop.f32.mrf.mxu0
      %v1830 = vadd.f32 %v1733, %v1829
      %v1831 = vpop.f32.mrf.mxu0
      %1832 = vmatprep.mubr.f32.mxu0 0.0
      %v1833 = vand.u32 %v1443, 4294901760
      %v1834 = vsub.f32 %v1443, %v1833
      %v1835 = vand.u32 %v1834, 4294901760
      %1836 = vmatmul.mubr.f32.gmra.mxu0 %v1835
      %v1837 = vpop.f32.mrf.mxu0
      %v1838 = vadd.f32 %v1740, %v1837
      %v1839 = vpop.f32.mrf.mxu0
      %1840 = vmatprep.mubr.f32.mxu0 0.0
      %v1841 = vand.u32 %v1445, 4294901760
      %v1842 = vsub.f32 %v1445, %v1841
      %v1843 = vand.u32 %v1842, 4294901760
      %1844 = vmatmul.mubr.f32.gmra.mxu0 %v1843
      %v1845 = vpop.f32.mrf.mxu0
      %v1846 = vadd.f32 %v1747, %v1845
      %v1847 = vpop.f32.mrf.mxu0
      %1848 = vdwg.mxu0
      %1849 = vmatprep.subr.mxu0 0.0
      %1850 = vmatpush1.msra.mxu0 0.0
      %1851 = vmatprep.subr.mxu0 0.0
      %1852 = vmatpush1.msra.mxu0 0.0
      %1853 = vmatprep.subr.mxu0 0.0
      %1854 = vmatpush1.msra.mxu0 0.0
      %1855 = vmatprep.subr.mxu0 0.0
      %1856 = vmatpush1.msra.mxu0 0.0
      %1857 = vmatprep.subr.mxu0 0.0
      %1858 = vmatpush1.msra.mxu0 0.0
      %1859 = vmatprep.subr.mxu0 0.0
      %1860 = vmatpush1.msra.mxu0 0.0
      %1861 = vmatprep.subr.mxu0 0.0
      %1862 = vmatpush1.msra.mxu0 0.0
      %1863 = vmatprep.subr.mxu0 0.0
      %1864 = vmatpush1.msra.mxu0 0.0
      %1865 = vmatprep.subr.mxu0 0.0
      %1866 = vmatpush1.msra.mxu0 0.0
      %1867 = vmatprep.subr.mxu0 0.0
      %1868 = vmatpush1.msra.mxu0 0.0
      %1869 = vmatprep.subr.mxu0 0.0
      %1870 = vmatpush1.msra.mxu0 0.0
      %1871 = vmatprep.subr.mxu0 0.0
      %1872 = vmatpush1.msra.mxu0 0.0
      %1873 = vmatprep.subr.mxu0 0.0
      %1874 = vmatpush1.msra.mxu0 0.0
      %1875 = vmatprep.subr.mxu0 0.0
      %1876 = vmatpush1.msra.mxu0 0.0
      %1877 = vmatprep.subr.mxu0 0.0
      %v1878 = vand.u32 %v184, 4294901760
      %v1879 = vsub.f32 %v184, %v1878
      %v1880 = vand.u32 %v1879, 4294901760
      %1881 = vmatpush1.msra.mxu0 %v1880
      %1882 = vmatprep.subr.mxu0 0.0
      %v1883 = vand.u32 %v183, 4294901760
      %v1884 = vsub.f32 %v183, %v1883
      %v1885 = vand.u32 %v1884, 4294901760
      %1886 = vmatpush1.msra.mxu0 %v1885
      %1887 = vmatprep.subr.mxu0 0.0
      %1888 = vmatpush2.msra.mxu0 0.0
      %1889 = vmatprep.subr.mxu0 0.0
      %1890 = vmatpush2.msra.mxu0 0.0
      %1891 = vmatprep.subr.mxu0 0.0
      %1892 = vmatpush2.msra.mxu0 0.0
      %1893 = vmatprep.subr.mxu0 0.0
      %1894 = vmatpush2.msra.mxu0 0.0
      %1895 = vmatprep.subr.mxu0 0.0
      %1896 = vmatpush2.msra.mxu0 0.0
      %1897 = vmatprep.subr.mxu0 0.0
      %1898 = vmatpush2.msra.mxu0 0.0
      %1899 = vmatprep.subr.mxu0 0.0
      %1900 = vmatpush2.msra.mxu0 0.0
      %1901 = vmatprep.subr.mxu0 0.0
      %1902 = vmatpush2.msra.mxu0 0.0
      %1903 = vmatprep.subr.mxu0 0.0
      %1904 = vmatpush2.msra.mxu0 0.0
      %1905 = vmatprep.subr.mxu0 0.0
      %1906 = vmatpush2.msra.mxu0 0.0
      %1907 = vmatprep.subr.mxu0 0.0
      %1908 = vmatpush2.msra.mxu0 0.0
      %1909 = vmatprep.subr.mxu0 0.0
      %1910 = vmatpush2.msra.mxu0 0.0
      %1911 = vmatprep.subr.mxu0 0.0
      %1912 = vmatpush2.msra.mxu0 0.0
      %1913 = vmatprep.subr.mxu0 0.0
      %1914 = vmatpush2.msra.mxu0 0.0
      %1915 = vmatprep.subr.mxu0 0.0
      %1916 = vmatpush2.msra.mxu0 0.0
      %1917 = vmatprep.subr.mxu0 0.0
      %1918 = vmatpush2.msra.mxu0 0.0
      %1919 = vmatprep.mubr.f32.mxu0 0.0
      %v1920 = vand.u32 %v1439, 4294901760
      %1921 = vmatmul.mubr.f32.gmra.mxu0 %v1920
      %v1922 = vpop.f32.mrf.mxu0
      %v1923 = vadd.f32 %v1822, %v1922
      %v1924 = vpop.f32.mrf.mxu0
      %1925 = vmatprep.mubr.f32.mxu0 0.0
      %v1926 = vand.u32 %v1441, 4294901760
      %1927 = vmatmul.mubr.f32.gmra.mxu0 %v1926
      %v1928 = vpop.f32.mrf.mxu0
      %v1929 = vadd.f32 %v1830, %v1928
      %v1930 = vpop.f32.mrf.mxu0
      %1931 = vmatprep.mubr.f32.mxu0 0.0
      %v1932 = vand.u32 %v1443, 4294901760
      %1933 = vmatmul.mubr.f32.gmra.mxu0 %v1932
      %v1934 = vpop.f32.mrf.mxu0
      %v1935 = vadd.f32 %v1838, %v1934
      %v1936 = vpop.f32.mrf.mxu0
      %1937 = vmatprep.mubr.f32.mxu0 0.0
      %v1938 = vand.u32 %v1445, 4294901760
      %1939 = vmatmul.mubr.f32.gmra.mxu0 %v1938
      %v1940 = vpop.f32.mrf.mxu0
      %v1941 = vadd.f32 %v1846, %v1940
      %v1942 = vpop.f32.mrf.mxu0
      %1943 = vdwg.mxu0
      %1944 = vmatprep.subr.mxu0 0.0
      %1945 = vmatpush1.msra.mxu0 0.0
      %1946 = vmatprep.subr.mxu0 0.0
      %1947 = vmatpush1.msra.mxu0 0.0
      %1948 = vmatprep.subr.mxu0 0.0
      %1949 = vmatpush1.msra.mxu0 0.0
      %1950 = vmatprep.subr.mxu0 0.0
      %1951 = vmatpush1.msra.mxu0 0.0
      %1952 = vmatprep.subr.mxu0 0.0
      %1953 = vmatpush1.msra.mxu0 0.0
      %1954 = vmatprep.subr.mxu0 0.0
      %1955 = vmatpush1.msra.mxu0 0.0
      %1956 = vmatprep.subr.mxu0 0.0
      %1957 = vmatpush1.msra.mxu0 0.0
      %1958 = vmatprep.subr.mxu0 0.0
      %1959 = vmatpush1.msra.mxu0 0.0
      %1960 = vmatprep.subr.mxu0 0.0
      %1961 = vmatpush1.msra.mxu0 0.0
      %1962 = vmatprep.subr.mxu0 0.0
      %1963 = vmatpush1.msra.mxu0 0.0
      %1964 = vmatprep.subr.mxu0 0.0
      %1965 = vmatpush1.msra.mxu0 0.0
      %1966 = vmatprep.subr.mxu0 0.0
      %1967 = vmatpush1.msra.mxu0 0.0
      %1968 = vmatprep.subr.mxu0 0.0
      %1969 = vmatpush1.msra.mxu0 0.0
      %1970 = vmatprep.subr.mxu0 0.0
      %1971 = vmatpush1.msra.mxu0 0.0
      %1972 = vmatprep.subr.mxu0 0.0
      %v1973 = vand.u32 %v184, 4294901760
      %1974 = vmatpush1.msra.mxu0 %v1973
      %1975 = vmatprep.subr.mxu0 0.0
      %v1976 = vand.u32 %v183, 4294901760
      %1977 = vmatpush1.msra.mxu0 %v1976
      %1978 = vmatprep.subr.mxu0 0.0
      %1979 = vmatpush2.msra.mxu0 0.0
      %1980 = vmatprep.subr.mxu0 0.0
      %1981 = vmatpush2.msra.mxu0 0.0
      %1982 = vmatprep.subr.mxu0 0.0
      %1983 = vmatpush2.msra.mxu0 0.0
      %1984 = vmatprep.subr.mxu0 0.0
      %1985 = vmatpush2.msra.mxu0 0.0
      %1986 = vmatprep.subr.mxu0 0.0
      %1987 = vmatpush2.msra.mxu0 0.0
      %1988 = vmatprep.subr.mxu0 0.0
      %1989 = vmatpush2.msra.mxu0 0.0
      %1990 = vmatprep.subr.mxu0 0.0
      %1991 = vmatpush2.msra.mxu0 0.0
      %1992 = vmatprep.subr.mxu0 0.0
      %1993 = vmatpush2.msra.mxu0 0.0
      %1994 = vmatprep.subr.mxu0 0.0
      %1995 = vmatpush2.msra.mxu0 0.0
      %1996 = vmatprep.subr.mxu0 0.0
      %1997 = vmatpush2.msra.mxu0 0.0
      %1998 = vmatprep.subr.mxu0 0.0
      %1999 = vmatpush2.msra.mxu0 0.0
      %2000 = vmatprep.subr.mxu0 0.0
      %2001 = vmatpush2.msra.mxu0 0.0
      %2002 = vmatprep.subr.mxu0 0.0
      %2003 = vmatpush2.msra.mxu0 0.0
      %2004 = vmatprep.subr.mxu0 0.0
      %2005 = vmatpush2.msra.mxu0 0.0
      %2006 = vmatprep.subr.mxu0 0.0
      %2007 = vmatpush2.msra.mxu0 0.0
      %2008 = vmatprep.subr.mxu0 0.0
      %2009 = vmatpush2.msra.mxu0 0.0
      %2010 = vmatprep.mubr.f32.mxu0 0.0
      %v2011 = vand.u32 %v1439, 4294901760
      %2012 = vmatmul.mubr.f32.gmra.mxu0 %v2011
      %v2013 = vpop.f32.mrf.mxu0
      %v2014 = vadd.f32 %v1923, %v2013
      %v2015 = vpop.f32.mrf.mxu0
      %2016 = vmatprep.mubr.f32.mxu0 0.0
      %v2017 = vand.u32 %v1441, 4294901760
      %2018 = vmatmul.mubr.f32.gmra.mxu0 %v2017
      %v2019 = vpop.f32.mrf.mxu0
      %v2020 = vadd.f32 %v1929, %v2019
      %v2021 = vpop.f32.mrf.mxu0
      %2022 = vmatprep.mubr.f32.mxu0 0.0
      %v2023 = vand.u32 %v1443, 4294901760
      %2024 = vmatmul.mubr.f32.gmra.mxu0 %v2023
      %v2025 = vpop.f32.mrf.mxu0
      %v2026 = vadd.f32 %v1935, %v2025
      %v2027 = vpop.f32.mrf.mxu0
      %2028 = vmatprep.mubr.f32.mxu0 0.0
      %v2029 = vand.u32 %v1445, 4294901760
      %2030 = vmatmul.mubr.f32.gmra.mxu0 %v2029
      %v2031 = vpop.f32.mrf.mxu0
      %v2032 = vadd.f32 %v1941, %v2031
      %v2033 = vpop.f32.mrf.mxu0
      %2034 = vdwg.mxu0
      %s2035 = scalar_lea.vmem %s181, 64
      %2036 = vst.msk [vmem:[%s2035] sm:$0xff] %vm813, %v2014
      %2037 = vst.msk [vmem:[%s2035 + $0x8] sm:$0xff] %vm813, %v2020
      %2038 = vst.msk [vmem:[%s2035 + $0x10] sm:$0xff] %vm813, %v2026
      %2039 = vst.msk [vmem:[%s2035 + $0x18] sm:$0xff] %vm813, %v2032
      %2040 = vmatprep.subr.mxu0 0.0
      %2041 = vmatpush1.msra.mxu0 0.0
      %2042 = vmatprep.subr.mxu0 0.0
      %2043 = vmatpush1.msra.mxu0 0.0
      %2044 = vmatprep.subr.mxu0 0.0
      %2045 = vmatpush1.msra.mxu0 0.0
      %2046 = vmatprep.subr.mxu0 0.0
      %2047 = vmatpush1.msra.mxu0 0.0
      %2048 = vmatprep.subr.mxu0 0.0
      %2049 = vmatpush1.msra.mxu0 0.0
      %2050 = vmatprep.subr.mxu0 0.0
      %2051 = vmatpush1.msra.mxu0 0.0
      %2052 = vmatprep.subr.mxu0 0.0
      %2053 = vmatpush1.msra.mxu0 0.0
      %2054 = vmatprep.subr.mxu0 0.0
      %2055 = vmatpush1.msra.mxu0 0.0
      %2056 = vmatprep.subr.mxu0 0.0
      %2057 = vmatpush1.msra.mxu0 0.0
      %2058 = vmatprep.subr.mxu0 0.0
      %2059 = vmatpush1.msra.mxu0 0.0
      %2060 = vmatprep.subr.mxu0 0.0
      %2061 = vmatpush1.msra.mxu0 0.0
      %2062 = vmatprep.subr.mxu0 0.0
      %2063 = vmatpush1.msra.mxu0 0.0
      %2064 = vmatprep.subr.mxu0 0.0
      %2065 = vmatpush1.msra.mxu0 0.0
      %2066 = vmatprep.subr.mxu0 0.0
      %2067 = vmatpush1.msra.mxu0 0.0
      %2068 = vmatprep.subr.mxu0 0.0
      %v2069 = vand.u32 %v187, 4294901760
      %2070 = vmatpush1.msra.mxu0 %v2069
      %2071 = vmatprep.subr.mxu0 0.0
      %v2072 = vand.u32 %v186, 4294901760
      %2073 = vmatpush1.msra.mxu0 %v2072
      %2074 = vmatprep.subr.mxu0 0.0
      %2075 = vmatpush2.msra.mxu0 0.0
      %2076 = vmatprep.subr.mxu0 0.0
      %2077 = vmatpush2.msra.mxu0 0.0
      %2078 = vmatprep.subr.mxu0 0.0
      %2079 = vmatpush2.msra.mxu0 0.0
      %2080 = vmatprep.subr.mxu0 0.0
      %2081 = vmatpush2.msra.mxu0 0.0
      %2082 = vmatprep.subr.mxu0 0.0
      %2083 = vmatpush2.msra.mxu0 0.0
      %2084 = vmatprep.subr.mxu0 0.0
      %2085 = vmatpush2.msra.mxu0 0.0
      %2086 = vmatprep.subr.mxu0 0.0
      %2087 = vmatpush2.msra.mxu0 0.0
      %2088 = vmatprep.subr.mxu0 0.0
      %2089 = vmatpush2.msra.mxu0 0.0
      %2090 = vmatprep.subr.mxu0 0.0
      %2091 = vmatpush2.msra.mxu0 0.0
      %2092 = vmatprep.subr.mxu0 0.0
      %2093 = vmatpush2.msra.mxu0 0.0
      %2094 = vmatprep.subr.mxu0 0.0
      %2095 = vmatpush2.msra.mxu0 0.0
      %2096 = vmatprep.subr.mxu0 0.0
      %2097 = vmatpush2.msra.mxu0 0.0
      %2098 = vmatprep.subr.mxu0 0.0
      %2099 = vmatpush2.msra.mxu0 0.0
      %2100 = vmatprep.subr.mxu0 0.0
      %2101 = vmatpush2.msra.mxu0 0.0
      %2102 = vmatprep.subr.mxu0 0.0
      %2103 = vmatpush2.msra.mxu0 0.0
      %2104 = vmatprep.subr.mxu0 0.0
      %2105 = vmatpush2.msra.mxu0 0.0
      %2106 = vmatprep.mubr.f32.mxu0 0.0
      %v2107 = vand.u32 %v1439, 4294901760
      %v2108 = vsub.f32 %v1439, %v2107
      %v2109 = vand.u32 %v2108, 4294901760
      %v2110 = vsub.f32 %v2108, %v2109
      %v2111 = vand.u32 %v2110, 4294901760
      %2112 = vmatmul.mubr.f32.gmra.mxu0 %v2111
      %v2113 = vpop.f32.mrf.mxu0
      %v2114 = vadd.f32 0.0, %v2113
      %v2115 = vpop.f32.mrf.mxu0
      %2116 = vmatprep.mubr.f32.mxu0 0.0
      %v2117 = vand.u32 %v1441, 4294901760
      %v2118 = vsub.f32 %v1441, %v2117
      %v2119 = vand.u32 %v2118, 4294901760
      %v2120 = vsub.f32 %v2118, %v2119
      %v2121 = vand.u32 %v2120, 4294901760
      %2122 = vmatmul.mubr.f32.gmra.mxu0 %v2121
      %v2123 = vpop.f32.mrf.mxu0
      %v2124 = vadd.f32 0.0, %v2123
      %v2125 = vpop.f32.mrf.mxu0
      %2126 = vmatprep.mubr.f32.mxu0 0.0
      %v2127 = vand.u32 %v1443, 4294901760
      %v2128 = vsub.f32 %v1443, %v2127
      %v2129 = vand.u32 %v2128, 4294901760
      %v2130 = vsub.f32 %v2128, %v2129
      %v2131 = vand.u32 %v2130, 4294901760
      %2132 = vmatmul.mubr.f32.gmra.mxu0 %v2131
      %v2133 = vpop.f32.mrf.mxu0
      %v2134 = vadd.f32 0.0, %v2133
      %v2135 = vpop.f32.mrf.mxu0
      %2136 = vmatprep.mubr.f32.mxu0 0.0
      %v2137 = vand.u32 %v1445, 4294901760
      %v2138 = vsub.f32 %v1445, %v2137
      %v2139 = vand.u32 %v2138, 4294901760
      %v2140 = vsub.f32 %v2138, %v2139
      %v2141 = vand.u32 %v2140, 4294901760
      %2142 = vmatmul.mubr.f32.gmra.mxu0 %v2141
      %v2143 = vpop.f32.mrf.mxu0
      %v2144 = vadd.f32 0.0, %v2143
      %v2145 = vpop.f32.mrf.mxu0
      %2146 = vdwg.mxu0
      %2147 = vmatprep.subr.mxu0 0.0
      %2148 = vmatpush1.msra.mxu0 0.0
      %2149 = vmatprep.subr.mxu0 0.0
      %2150 = vmatpush1.msra.mxu0 0.0
      %2151 = vmatprep.subr.mxu0 0.0
      %2152 = vmatpush1.msra.mxu0 0.0
      %2153 = vmatprep.subr.mxu0 0.0
      %2154 = vmatpush1.msra.mxu0 0.0
      %2155 = vmatprep.subr.mxu0 0.0
      %2156 = vmatpush1.msra.mxu0 0.0
      %2157 = vmatprep.subr.mxu0 0.0
      %2158 = vmatpush1.msra.mxu0 0.0
      %2159 = vmatprep.subr.mxu0 0.0
      %2160 = vmatpush1.msra.mxu0 0.0
      %2161 = vmatprep.subr.mxu0 0.0
      %2162 = vmatpush1.msra.mxu0 0.0
      %2163 = vmatprep.subr.mxu0 0.0
      %2164 = vmatpush1.msra.mxu0 0.0
      %2165 = vmatprep.subr.mxu0 0.0
      %2166 = vmatpush1.msra.mxu0 0.0
      %2167 = vmatprep.subr.mxu0 0.0
      %2168 = vmatpush1.msra.mxu0 0.0
      %2169 = vmatprep.subr.mxu0 0.0
      %2170 = vmatpush1.msra.mxu0 0.0
      %2171 = vmatprep.subr.mxu0 0.0
      %2172 = vmatpush1.msra.mxu0 0.0
      %2173 = vmatprep.subr.mxu0 0.0
      %2174 = vmatpush1.msra.mxu0 0.0
      %2175 = vmatprep.subr.mxu0 0.0
      %v2176 = vand.u32 %v187, 4294901760
      %v2177 = vsub.f32 %v187, %v2176
      %v2178 = vand.u32 %v2177, 4294901760
      %v2179 = vsub.f32 %v2177, %v2178
      %v2180 = vand.u32 %v2179, 4294901760
      %2181 = vmatpush1.msra.mxu0 %v2180
      %2182 = vmatprep.subr.mxu0 0.0
      %v2183 = vand.u32 %v186, 4294901760
      %v2184 = vsub.f32 %v186, %v2183
      %v2185 = vand.u32 %v2184, 4294901760
      %v2186 = vsub.f32 %v2184, %v2185
      %v2187 = vand.u32 %v2186, 4294901760
      %2188 = vmatpush1.msra.mxu0 %v2187
      %2189 = vmatprep.subr.mxu0 0.0
      %2190 = vmatpush2.msra.mxu0 0.0
      %2191 = vmatprep.subr.mxu0 0.0
      %2192 = vmatpush2.msra.mxu0 0.0
      %2193 = vmatprep.subr.mxu0 0.0
      %2194 = vmatpush2.msra.mxu0 0.0
      %2195 = vmatprep.subr.mxu0 0.0
      %2196 = vmatpush2.msra.mxu0 0.0
      %2197 = vmatprep.subr.mxu0 0.0
      %2198 = vmatpush2.msra.mxu0 0.0
      %2199 = vmatprep.subr.mxu0 0.0
      %2200 = vmatpush2.msra.mxu0 0.0
      %2201 = vmatprep.subr.mxu0 0.0
      %2202 = vmatpush2.msra.mxu0 0.0
      %2203 = vmatprep.subr.mxu0 0.0
      %2204 = vmatpush2.msra.mxu0 0.0
      %2205 = vmatprep.subr.mxu0 0.0
      %2206 = vmatpush2.msra.mxu0 0.0
      %2207 = vmatprep.subr.mxu0 0.0
      %2208 = vmatpush2.msra.mxu0 0.0
      %2209 = vmatprep.subr.mxu0 0.0
      %2210 = vmatpush2.msra.mxu0 0.0
      %2211 = vmatprep.subr.mxu0 0.0
      %2212 = vmatpush2.msra.mxu0 0.0
      %2213 = vmatprep.subr.mxu0 0.0
      %2214 = vmatpush2.msra.mxu0 0.0
      %2215 = vmatprep.subr.mxu0 0.0
      %2216 = vmatpush2.msra.mxu0 0.0
      %2217 = vmatprep.subr.mxu0 0.0
      %2218 = vmatpush2.msra.mxu0 0.0
      %2219 = vmatprep.subr.mxu0 0.0
      %2220 = vmatpush2.msra.mxu0 0.0
      %2221 = vmatprep.mubr.f32.mxu0 0.0
      %v2222 = vand.u32 %v1439, 4294901760
      %2223 = vmatmul.mubr.f32.gmra.mxu0 %v2222
      %v2224 = vpop.f32.mrf.mxu0
      %v2225 = vadd.f32 %v2114, %v2224
      %v2226 = vpop.f32.mrf.mxu0
      %2227 = vmatprep.mubr.f32.mxu0 0.0
      %v2228 = vand.u32 %v1441, 4294901760
      %2229 = vmatmul.mubr.f32.gmra.mxu0 %v2228
      %v2230 = vpop.f32.mrf.mxu0
      %v2231 = vadd.f32 %v2124, %v2230
      %v2232 = vpop.f32.mrf.mxu0
      %2233 = vmatprep.mubr.f32.mxu0 0.0
      %v2234 = vand.u32 %v1443, 4294901760
      %2235 = vmatmul.mubr.f32.gmra.mxu0 %v2234
      %v2236 = vpop.f32.mrf.mxu0
      %v2237 = vadd.f32 %v2134, %v2236
      %v2238 = vpop.f32.mrf.mxu0
      %2239 = vmatprep.mubr.f32.mxu0 0.0
      %v2240 = vand.u32 %v1445, 4294901760
      %2241 = vmatmul.mubr.f32.gmra.mxu0 %v2240
      %v2242 = vpop.f32.mrf.mxu0
      %v2243 = vadd.f32 %v2144, %v2242
      %v2244 = vpop.f32.mrf.mxu0
      %2245 = vdwg.mxu0
      %2246 = vmatprep.subr.mxu0 0.0
      %2247 = vmatpush1.msra.mxu0 0.0
      %2248 = vmatprep.subr.mxu0 0.0
      %2249 = vmatpush1.msra.mxu0 0.0
      %2250 = vmatprep.subr.mxu0 0.0
      %2251 = vmatpush1.msra.mxu0 0.0
      %2252 = vmatprep.subr.mxu0 0.0
      %2253 = vmatpush1.msra.mxu0 0.0
      %2254 = vmatprep.subr.mxu0 0.0
      %2255 = vmatpush1.msra.mxu0 0.0
      %2256 = vmatprep.subr.mxu0 0.0
      %2257 = vmatpush1.msra.mxu0 0.0
      %2258 = vmatprep.subr.mxu0 0.0
      %2259 = vmatpush1.msra.mxu0 0.0
      %2260 = vmatprep.subr.mxu0 0.0
      %2261 = vmatpush1.msra.mxu0 0.0
      %2262 = vmatprep.subr.mxu0 0.0
      %2263 = vmatpush1.msra.mxu0 0.0
      %2264 = vmatprep.subr.mxu0 0.0
      %2265 = vmatpush1.msra.mxu0 0.0
      %2266 = vmatprep.subr.mxu0 0.0
      %2267 = vmatpush1.msra.mxu0 0.0
      %2268 = vmatprep.subr.mxu0 0.0
      %2269 = vmatpush1.msra.mxu0 0.0
      %2270 = vmatprep.subr.mxu0 0.0
      %2271 = vmatpush1.msra.mxu0 0.0
      %2272 = vmatprep.subr.mxu0 0.0
      %2273 = vmatpush1.msra.mxu0 0.0
      %2274 = vmatprep.subr.mxu0 0.0
      %v2275 = vand.u32 %v187, 4294901760
      %v2276 = vsub.f32 %v187, %v2275
      %2277 = vmatpush1.msra.mxu0 %v2276
      %2278 = vmatprep.subr.mxu0 0.0
      %v2279 = vand.u32 %v186, 4294901760
      %v2280 = vsub.f32 %v186, %v2279
      %2281 = vmatpush1.msra.mxu0 %v2280
      %2282 = vmatprep.subr.mxu0 0.0
      %2283 = vmatpush2.msra.mxu0 0.0
      %2284 = vmatprep.subr.mxu0 0.0
      %2285 = vmatpush2.msra.mxu0 0.0
      %2286 = vmatprep.subr.mxu0 0.0
      %2287 = vmatpush2.msra.mxu0 0.0
      %2288 = vmatprep.subr.mxu0 0.0
      %2289 = vmatpush2.msra.mxu0 0.0
      %2290 = vmatprep.subr.mxu0 0.0
      %2291 = vmatpush2.msra.mxu0 0.0
      %2292 = vmatprep.subr.mxu0 0.0
      %2293 = vmatpush2.msra.mxu0 0.0
      %2294 = vmatprep.subr.mxu0 0.0
      %2295 = vmatpush2.msra.mxu0 0.0
      %2296 = vmatprep.subr.mxu0 0.0
      %2297 = vmatpush2.msra.mxu0 0.0
      %2298 = vmatprep.subr.mxu0 0.0
      %2299 = vmatpush2.msra.mxu0 0.0
      %2300 = vmatprep.subr.mxu0 0.0
      %2301 = vmatpush2.msra.mxu0 0.0
      %2302 = vmatprep.subr.mxu0 0.0
      %2303 = vmatpush2.msra.mxu0 0.0
      %2304 = vmatprep.subr.mxu0 0.0
      %2305 = vmatpush2.msra.mxu0 0.0
      %2306 = vmatprep.subr.mxu0 0.0
      %2307 = vmatpush2.msra.mxu0 0.0
      %2308 = vmatprep.subr.mxu0 0.0
      %2309 = vmatpush2.msra.mxu0 0.0
      %2310 = vmatprep.subr.mxu0 0.0
      %2311 = vmatpush2.msra.mxu0 0.0
      %2312 = vmatprep.subr.mxu0 0.0
      %2313 = vmatpush2.msra.mxu0 0.0
      %2314 = vmatprep.mubr.f32.mxu0 0.0
      %v2315 = vand.u32 %v1439, 4294901760
      %v2316 = vsub.f32 %v1439, %v2315
      %2317 = vmatmul.mubr.f32.gmra.mxu0 %v2316
      %v2318 = vpop.f32.mrf.mxu0
      %v2319 = vadd.f32 %v2225, %v2318
      %v2320 = vpop.f32.mrf.mxu0
      %2321 = vmatprep.mubr.f32.mxu0 0.0
      %v2322 = vand.u32 %v1441, 4294901760
      %v2323 = vsub.f32 %v1441, %v2322
      %2324 = vmatmul.mubr.f32.gmra.mxu0 %v2323
      %v2325 = vpop.f32.mrf.mxu0
      %v2326 = vadd.f32 %v2231, %v2325
      %v2327 = vpop.f32.mrf.mxu0
      %2328 = vmatprep.mubr.f32.mxu0 0.0
      %v2329 = vand.u32 %v1443, 4294901760
      %v2330 = vsub.f32 %v1443, %v2329
      %2331 = vmatmul.mubr.f32.gmra.mxu0 %v2330
      %v2332 = vpop.f32.mrf.mxu0
      %v2333 = vadd.f32 %v2237, %v2332
      %v2334 = vpop.f32.mrf.mxu0
      %2335 = vmatprep.mubr.f32.mxu0 0.0
      %v2336 = vand.u32 %v1445, 4294901760
      %v2337 = vsub.f32 %v1445, %v2336
      %2338 = vmatmul.mubr.f32.gmra.mxu0 %v2337
      %v2339 = vpop.f32.mrf.mxu0
      %v2340 = vadd.f32 %v2243, %v2339
      %v2341 = vpop.f32.mrf.mxu0
      %2342 = vdwg.mxu0
      %2343 = vmatprep.subr.mxu0 0.0
      %2344 = vmatpush1.msra.mxu0 0.0
      %2345 = vmatprep.subr.mxu0 0.0
      %2346 = vmatpush1.msra.mxu0 0.0
      %2347 = vmatprep.subr.mxu0 0.0
      %2348 = vmatpush1.msra.mxu0 0.0
      %2349 = vmatprep.subr.mxu0 0.0
      %2350 = vmatpush1.msra.mxu0 0.0
      %2351 = vmatprep.subr.mxu0 0.0
      %2352 = vmatpush1.msra.mxu0 0.0
      %2353 = vmatprep.subr.mxu0 0.0
      %2354 = vmatpush1.msra.mxu0 0.0
      %2355 = vmatprep.subr.mxu0 0.0
      %2356 = vmatpush1.msra.mxu0 0.0
      %2357 = vmatprep.subr.mxu0 0.0
      %2358 = vmatpush1.msra.mxu0 0.0
      %2359 = vmatprep.subr.mxu0 0.0
      %2360 = vmatpush1.msra.mxu0 0.0
      %2361 = vmatprep.subr.mxu0 0.0
      %2362 = vmatpush1.msra.mxu0 0.0
      %2363 = vmatprep.subr.mxu0 0.0
      %2364 = vmatpush1.msra.mxu0 0.0
      %2365 = vmatprep.subr.mxu0 0.0
      %2366 = vmatpush1.msra.mxu0 0.0
      %2367 = vmatprep.subr.mxu0 0.0
      %2368 = vmatpush1.msra.mxu0 0.0
      %2369 = vmatprep.subr.mxu0 0.0
      %2370 = vmatpush1.msra.mxu0 0.0
      %2371 = vmatprep.subr.mxu0 0.0
      %v2372 = vand.u32 %v187, 4294901760
      %2373 = vmatpush1.msra.mxu0 %v2372
      %2374 = vmatprep.subr.mxu0 0.0
      %v2375 = vand.u32 %v186, 4294901760
      %2376 = vmatpush1.msra.mxu0 %v2375
      %2377 = vmatprep.subr.mxu0 0.0
      %2378 = vmatpush2.msra.mxu0 0.0
      %2379 = vmatprep.subr.mxu0 0.0
      %2380 = vmatpush2.msra.mxu0 0.0
      %2381 = vmatprep.subr.mxu0 0.0
      %2382 = vmatpush2.msra.mxu0 0.0
      %2383 = vmatprep.subr.mxu0 0.0
      %2384 = vmatpush2.msra.mxu0 0.0
      %2385 = vmatprep.subr.mxu0 0.0
      %2386 = vmatpush2.msra.mxu0 0.0
      %2387 = vmatprep.subr.mxu0 0.0
      %2388 = vmatpush2.msra.mxu0 0.0
      %2389 = vmatprep.subr.mxu0 0.0
      %2390 = vmatpush2.msra.mxu0 0.0
      %2391 = vmatprep.subr.mxu0 0.0
      %2392 = vmatpush2.msra.mxu0 0.0
      %2393 = vmatprep.subr.mxu0 0.0
      %2394 = vmatpush2.msra.mxu0 0.0
      %2395 = vmatprep.subr.mxu0 0.0
      %2396 = vmatpush2.msra.mxu0 0.0
      %2397 = vmatprep.subr.mxu0 0.0
      %2398 = vmatpush2.msra.mxu0 0.0
      %2399 = vmatprep.subr.mxu0 0.0
      %2400 = vmatpush2.msra.mxu0 0.0
      %2401 = vmatprep.subr.mxu0 0.0
      %2402 = vmatpush2.msra.mxu0 0.0
      %2403 = vmatprep.subr.mxu0 0.0
      %2404 = vmatpush2.msra.mxu0 0.0
      %2405 = vmatprep.subr.mxu0 0.0
      %2406 = vmatpush2.msra.mxu0 0.0
      %2407 = vmatprep.subr.mxu0 0.0
      %2408 = vmatpush2.msra.mxu0 0.0
      %2409 = vmatprep.mubr.f32.mxu0 0.0
      %v2410 = vand.u32 %v1439, 4294901760
      %v2411 = vsub.f32 %v1439, %v2410
      %v2412 = vand.u32 %v2411, 4294901760
      %2413 = vmatmul.mubr.f32.gmra.mxu0 %v2412
      %v2414 = vpop.f32.mrf.mxu0
      %v2415 = vadd.f32 %v2319, %v2414
      %v2416 = vpop.f32.mrf.mxu0
      %2417 = vmatprep.mubr.f32.mxu0 0.0
      %v2418 = vand.u32 %v1441, 4294901760
      %v2419 = vsub.f32 %v1441, %v2418
      %v2420 = vand.u32 %v2419, 4294901760
      %2421 = vmatmul.mubr.f32.gmra.mxu0 %v2420
      %v2422 = vpop.f32.mrf.mxu0
      %v2423 = vadd.f32 %v2326, %v2422
      %v2424 = vpop.f32.mrf.mxu0
      %2425 = vmatprep.mubr.f32.mxu0 0.0
      %v2426 = vand.u32 %v1443, 4294901760
      %v2427 = vsub.f32 %v1443, %v2426
      %v2428 = vand.u32 %v2427, 4294901760
      %2429 = vmatmul.mubr.f32.gmra.mxu0 %v2428
      %v2430 = vpop.f32.mrf.mxu0
      %v2431 = vadd.f32 %v2333, %v2430
      %v2432 = vpop.f32.mrf.mxu0
      %2433 = vmatprep.mubr.f32.mxu0 0.0
      %v2434 = vand.u32 %v1445, 4294901760
      %v2435 = vsub.f32 %v1445, %v2434
      %v2436 = vand.u32 %v2435, 4294901760
      %2437 = vmatmul.mubr.f32.gmra.mxu0 %v2436
      %v2438 = vpop.f32.mrf.mxu0
      %v2439 = vadd.f32 %v2340, %v2438
      %v2440 = vpop.f32.mrf.mxu0
      %2441 = vdwg.mxu0
      %2442 = vmatprep.subr.mxu0 0.0
      %2443 = vmatpush1.msra.mxu0 0.0
      %2444 = vmatprep.subr.mxu0 0.0
      %2445 = vmatpush1.msra.mxu0 0.0
      %2446 = vmatprep.subr.mxu0 0.0
      %2447 = vmatpush1.msra.mxu0 0.0
      %2448 = vmatprep.subr.mxu0 0.0
      %2449 = vmatpush1.msra.mxu0 0.0
      %2450 = vmatprep.subr.mxu0 0.0
      %2451 = vmatpush1.msra.mxu0 0.0
      %2452 = vmatprep.subr.mxu0 0.0
      %2453 = vmatpush1.msra.mxu0 0.0
      %2454 = vmatprep.subr.mxu0 0.0
      %2455 = vmatpush1.msra.mxu0 0.0
      %2456 = vmatprep.subr.mxu0 0.0
      %2457 = vmatpush1.msra.mxu0 0.0
      %2458 = vmatprep.subr.mxu0 0.0
      %2459 = vmatpush1.msra.mxu0 0.0
      %2460 = vmatprep.subr.mxu0 0.0
      %2461 = vmatpush1.msra.mxu0 0.0
      %2462 = vmatprep.subr.mxu0 0.0
      %2463 = vmatpush1.msra.mxu0 0.0
      %2464 = vmatprep.subr.mxu0 0.0
      %2465 = vmatpush1.msra.mxu0 0.0
      %2466 = vmatprep.subr.mxu0 0.0
      %2467 = vmatpush1.msra.mxu0 0.0
      %2468 = vmatprep.subr.mxu0 0.0
      %2469 = vmatpush1.msra.mxu0 0.0
      %2470 = vmatprep.subr.mxu0 0.0
      %v2471 = vand.u32 %v187, 4294901760
      %v2472 = vsub.f32 %v187, %v2471
      %v2473 = vand.u32 %v2472, 4294901760
      %2474 = vmatpush1.msra.mxu0 %v2473
      %2475 = vmatprep.subr.mxu0 0.0
      %v2476 = vand.u32 %v186, 4294901760
      %v2477 = vsub.f32 %v186, %v2476
      %v2478 = vand.u32 %v2477, 4294901760
      %2479 = vmatpush1.msra.mxu0 %v2478
      %2480 = vmatprep.subr.mxu0 0.0
      %2481 = vmatpush2.msra.mxu0 0.0
      %2482 = vmatprep.subr.mxu0 0.0
      %2483 = vmatpush2.msra.mxu0 0.0
      %2484 = vmatprep.subr.mxu0 0.0
      %2485 = vmatpush2.msra.mxu0 0.0
      %2486 = vmatprep.subr.mxu0 0.0
      %2487 = vmatpush2.msra.mxu0 0.0
      %2488 = vmatprep.subr.mxu0 0.0
      %2489 = vmatpush2.msra.mxu0 0.0
      %2490 = vmatprep.subr.mxu0 0.0
      %2491 = vmatpush2.msra.mxu0 0.0
      %2492 = vmatprep.subr.mxu0 0.0
      %2493 = vmatpush2.msra.mxu0 0.0
      %2494 = vmatprep.subr.mxu0 0.0
      %2495 = vmatpush2.msra.mxu0 0.0
      %2496 = vmatprep.subr.mxu0 0.0
      %2497 = vmatpush2.msra.mxu0 0.0
      %2498 = vmatprep.subr.mxu0 0.0
      %2499 = vmatpush2.msra.mxu0 0.0
      %2500 = vmatprep.subr.mxu0 0.0
      %2501 = vmatpush2.msra.mxu0 0.0
      %2502 = vmatprep.subr.mxu0 0.0
      %2503 = vmatpush2.msra.mxu0 0.0
      %2504 = vmatprep.subr.mxu0 0.0
      %2505 = vmatpush2.msra.mxu0 0.0
      %2506 = vmatprep.subr.mxu0 0.0
      %2507 = vmatpush2.msra.mxu0 0.0
      %2508 = vmatprep.subr.mxu0 0.0
      %2509 = vmatpush2.msra.mxu0 0.0
      %2510 = vmatprep.subr.mxu0 0.0
      %2511 = vmatpush2.msra.mxu0 0.0
      %2512 = vmatprep.mubr.f32.mxu0 0.0
      %v2513 = vand.u32 %v1439, 4294901760
      %2514 = vmatmul.mubr.f32.gmra.mxu0 %v2513
      %v2515 = vpop.f32.mrf.mxu0
      %v2516 = vadd.f32 %v2415, %v2515
      %v2517 = vpop.f32.mrf.mxu0
      %2518 = vmatprep.mubr.f32.mxu0 0.0
      %v2519 = vand.u32 %v1441, 4294901760
      %2520 = vmatmul.mubr.f32.gmra.mxu0 %v2519
      %v2521 = vpop.f32.mrf.mxu0
      %v2522 = vadd.f32 %v2423, %v2521
      %v2523 = vpop.f32.mrf.mxu0
      %2524 = vmatprep.mubr.f32.mxu0 0.0
      %v2525 = vand.u32 %v1443, 4294901760
      %2526 = vmatmul.mubr.f32.gmra.mxu0 %v2525
      %v2527 = vpop.f32.mrf.mxu0
      %v2528 = vadd.f32 %v2431, %v2527
      %v2529 = vpop.f32.mrf.mxu0
      %2530 = vmatprep.mubr.f32.mxu0 0.0
      %v2531 = vand.u32 %v1445, 4294901760
      %2532 = vmatmul.mubr.f32.gmra.mxu0 %v2531
      %v2533 = vpop.f32.mrf.mxu0
      %v2534 = vadd.f32 %v2439, %v2533
      %v2535 = vpop.f32.mrf.mxu0
      %2536 = vdwg.mxu0
      %2537 = vmatprep.subr.mxu0 0.0
      %2538 = vmatpush1.msra.mxu0 0.0
      %2539 = vmatprep.subr.mxu0 0.0
      %2540 = vmatpush1.msra.mxu0 0.0
      %2541 = vmatprep.subr.mxu0 0.0
      %2542 = vmatpush1.msra.mxu0 0.0
      %2543 = vmatprep.subr.mxu0 0.0
      %2544 = vmatpush1.msra.mxu0 0.0
      %2545 = vmatprep.subr.mxu0 0.0
      %2546 = vmatpush1.msra.mxu0 0.0
      %2547 = vmatprep.subr.mxu0 0.0
      %2548 = vmatpush1.msra.mxu0 0.0
      %2549 = vmatprep.subr.mxu0 0.0
      %2550 = vmatpush1.msra.mxu0 0.0
      %2551 = vmatprep.subr.mxu0 0.0
      %2552 = vmatpush1.msra.mxu0 0.0
      %2553 = vmatprep.subr.mxu0 0.0
      %2554 = vmatpush1.msra.mxu0 0.0
      %2555 = vmatprep.subr.mxu0 0.0
      %2556 = vmatpush1.msra.mxu0 0.0
      %2557 = vmatprep.subr.mxu0 0.0
      %2558 = vmatpush1.msra.mxu0 0.0
      %2559 = vmatprep.subr.mxu0 0.0
      %2560 = vmatpush1.msra.mxu0 0.0
      %2561 = vmatprep.subr.mxu0 0.0
      %2562 = vmatpush1.msra.mxu0 0.0
      %2563 = vmatprep.subr.mxu0 0.0
      %2564 = vmatpush1.msra.mxu0 0.0
      %2565 = vmatprep.subr.mxu0 0.0
      %v2566 = vand.u32 %v187, 4294901760
      %2567 = vmatpush1.msra.mxu0 %v2566
      %2568 = vmatprep.subr.mxu0 0.0
      %v2569 = vand.u32 %v186, 4294901760
      %2570 = vmatpush1.msra.mxu0 %v2569
      %2571 = vmatprep.subr.mxu0 0.0
      %2572 = vmatpush2.msra.mxu0 0.0
      %2573 = vmatprep.subr.mxu0 0.0
      %2574 = vmatpush2.msra.mxu0 0.0
      %2575 = vmatprep.subr.mxu0 0.0
      %2576 = vmatpush2.msra.mxu0 0.0
      %2577 = vmatprep.subr.mxu0 0.0
      %2578 = vmatpush2.msra.mxu0 0.0
      %2579 = vmatprep.subr.mxu0 0.0
      %2580 = vmatpush2.msra.mxu0 0.0
      %2581 = vmatprep.subr.mxu0 0.0
      %2582 = vmatpush2.msra.mxu0 0.0
      %2583 = vmatprep.subr.mxu0 0.0
      %2584 = vmatpush2.msra.mxu0 0.0
      %2585 = vmatprep.subr.mxu0 0.0
      %2586 = vmatpush2.msra.mxu0 0.0
      %2587 = vmatprep.subr.mxu0 0.0
      %2588 = vmatpush2.msra.mxu0 0.0
      %2589 = vmatprep.subr.mxu0 0.0
      %2590 = vmatpush2.msra.mxu0 0.0
      %2591 = vmatprep.subr.mxu0 0.0
      %2592 = vmatpush2.msra.mxu0 0.0
      %2593 = vmatprep.subr.mxu0 0.0
      %2594 = vmatpush2.msra.mxu0 0.0
      %2595 = vmatprep.subr.mxu0 0.0
      %2596 = vmatpush2.msra.mxu0 0.0
      %2597 = vmatprep.subr.mxu0 0.0
      %2598 = vmatpush2.msra.mxu0 0.0
      %2599 = vmatprep.subr.mxu0 0.0
      %2600 = vmatpush2.msra.mxu0 0.0
      %2601 = vmatprep.subr.mxu0 0.0
      %2602 = vmatpush2.msra.mxu0 0.0
      %2603 = vmatprep.mubr.f32.mxu0 0.0
      %v2604 = vand.u32 %v1439, 4294901760
      %2605 = vmatmul.mubr.f32.gmra.mxu0 %v2604
      %v2606 = vpop.f32.mrf.mxu0
      %v2607 = vadd.f32 %v2516, %v2606
      %v2608 = vpop.f32.mrf.mxu0
      %2609 = vmatprep.mubr.f32.mxu0 0.0
      %v2610 = vand.u32 %v1441, 4294901760
      %2611 = vmatmul.mubr.f32.gmra.mxu0 %v2610
      %v2612 = vpop.f32.mrf.mxu0
      %v2613 = vadd.f32 %v2522, %v2612
      %v2614 = vpop.f32.mrf.mxu0
      %2615 = vmatprep.mubr.f32.mxu0 0.0
      %v2616 = vand.u32 %v1443, 4294901760
      %2617 = vmatmul.mubr.f32.gmra.mxu0 %v2616
      %v2618 = vpop.f32.mrf.mxu0
      %v2619 = vadd.f32 %v2528, %v2618
      %v2620 = vpop.f32.mrf.mxu0
      %2621 = vmatprep.mubr.f32.mxu0 0.0
      %v2622 = vand.u32 %v1445, 4294901760
      %2623 = vmatmul.mubr.f32.gmra.mxu0 %v2622
      %v2624 = vpop.f32.mrf.mxu0
      %v2625 = vadd.f32 %v2534, %v2624
      %v2626 = vpop.f32.mrf.mxu0
      %2627 = vdwg.mxu0
      %s2628 = scalar_lea.vmem %s181, 96
      %2629 = vst.msk [vmem:[%s2628] sm:$0xff] %vm813, %v2607
      %2630 = vst.msk [vmem:[%s2628 + $0x8] sm:$0xff] %vm813, %v2613
      %2631 = vst.msk [vmem:[%s2628 + $0x10] sm:$0xff] %vm813, %v2619
      %2632 = vst.msk [vmem:[%s2628 + $0x18] sm:$0xff] %vm813, %v2625
      %s2633 = smul.u32 4, %s18
      %p2634 = scmp.lt.s32.totalorder %s17, 1
      %s2635 = scalar_select %p2634, %s17, 1
      %p2636 = scmp.lt.s32.totalorder %s2633, 3
      %s2637 = scalar_select %p2636, %s2633, 3
      %s2638 = smul.addr %s2635, 16
      %s2639 = sadd.s32 %s2637, %s2638
      %s2640 = smul.addr %s2639, 8
      %s2641 = scalar_lea.vmem %s2, %s2640
      // Predicated region
      $region29: #{dwt.1} parent=27 // pred_check
        %p2642 = pneg %p94
      $region30: #{dwt.1} parent=27 // pred_check_branch
        %2644 = sbr.rel (%p2642) target = $region32
      $region31: #{dwt.1} parent=27 // pred_region
        %s2645 = smul.u32 4, %s18
      $region32: #{dwt.1} parent=27 // pred_fallthru
        _
    $region28: #{dwt.1} parent=5 // pred_fallthru
      _
    %p2646 = scmp.le.s32.totalorder 2, %s8
    // Predicated region
    $region33: #{dwt.1} parent=5 // pred_check
      %p2647 = pneg %p2646
    $region34: #{dwt.1} parent=5 // pred_check_branch
      %2649 = sbr.rel (%p2647) target = $region36
    $region35: #{dwt.1} parent=5 // pred_region
      %s2650 = ssub.s32 %s8, 2
      // Predicated region
      $region37: #{dwt.1} parent=35 // pred_check
        %p2651 = pneg %p100
      $region38: #{dwt.1} parent=35 // pred_check_branch
        %2653 = sbr.rel (%p2651) target = $region40
      $region39: #{dwt.1} parent=35 // pred_region
        %s2654 = smul.u32 4, %s20
        %p2655 = scmp.lt.s32.totalorder %s19, 1
        %s2656 = scalar_select %p2655, %s19, 1
        %p2657 = scmp.lt.s32.totalorder %s2654, 3
        %s2658 = scalar_select %p2657, %s2654, 3
        %s2659 = smul.addr %s2656, 16
        %s2660 = sadd.s32 %s2658, %s2659
        %s2661 = smul.addr %s2660, 8
        %s2662 = scalar_lea.vmem %s2, %s2661
      $region40: #{dwt.1} parent=35 // pred_fallthru
        _
    $region36: #{dwt.1} parent=5 // pred_fallthru
      _
  $region6: #{dwt.1} parent=0 // loop_footer
    %s12 = sadd.s32 1, %s8
  $region7: #{dwt.1} parent=0 // loop_footer_branch
    %7 = sbr.rel target = $region3
  $region8: #{dwt.1} parent=0 // loop_exit
    _

</llo_original>
